<compile_context>
chip_gen: v5e
topology: v5e:2x2
jax: 0.10.0
libtpu: 0.0.40
codegen_flags: <defaults>
</compile_context>

<pallas_src>
import functools

import jax
import jax.numpy as jnp
import numpy as np
from jax.experimental import pallas as pl
from jax.experimental.pallas import tpu as pltpu


# ---------------------------------------------------------------------------
# Helpers
# ---------------------------------------------------------------------------
def _round_up(x, m):
    return (x + m - 1) // m * m


def _pick_lane_tile(n, cap=512):
    """Lane (last-dim) tile: multiple of 128, <= cap, >=2 tiles when n >= 256
    so both TensorCores get work on v7x."""
    npad = _round_up(n, 128)
    if npad <= 256:
        return npad
    return min(cap, _round_up(npad // 2, 128))


def _vmem_limit_bytes():
    # Generation-aware budget: v7x has 64 MiB physical VMEM, v5e/v6e 128 MiB.
    try:
        cap = pltpu.get_tpu_info().vmem_capacity_bytes
        return int(max(32 * 1024 * 1024, min(64 * 1024 * 1024, (cap * 3) // 4)))
    except Exception:
        return 32 * 1024 * 1024


_VMEM_LIMIT = _vmem_limit_bytes()


# ---------------------------------------------------------------------------
# Pallas kernels (single K step -> no accumulator, fused bias + activation)
# ---------------------------------------------------------------------------
def _gemm_bias_act_kernel(a_ref, b_ref, bias_ref, o_ref, *, act):
    r = jnp.dot(a_ref[...], b_ref[...], preferred_element_type=jnp.float32)
    r = r + bias_ref[...]                       # f32 epilogue
    if act == "relu":
        r = jnp.maximum(r, 0.0)
    elif act == "tanh":
        r = jnp.tanh(r)
    o_ref[...] = r.astype(o_ref.dtype)


def _gemm_t_bias_tanh_kernel(bt_ref, a_ref, bias_ref, o_ref):
    # o = tanh(bt @ a^T + bias); output rows = (phase, cout), lanes = spatial.
    r = jax.lax.dot_general(
        bt_ref[...], a_ref[...],
        dimension_numbers=(((1,), (1,)), ((), ())),
        preferred_element_type=jnp.float32)
    o_ref[...] = jnp.tanh(r + bias_ref[...])


def gemm_bias_act(a, wd, *, n_true, act, out_dtype):
    """out = act(a @ b + bias); b/bias are pre-padded bf16/f32 from prepare."""
    bmat, bias2d = wd["b"], wd["bias"]
    Kp, Np = bmat.shape
    M, K = a.shape
    a = a.astype(jnp.bfloat16)
    tm = min(256, _round_up(M, 16))
    Mp = _round_up(M, tm)
    if (Mp, Kp) != (M, K):
        a = jnp.pad(a, ((0, Mp - M), (0, Kp - K)))
    tn = _pick_lane_tile(n_true)
    assert Np % tn == 0, (Np, tn)
    grid = (Mp // tm, Np // tn)

    out = pl.pallas_call(
        functools.partial(_gemm_bias_act_kernel, act=act),
        out_shape=jax.ShapeDtypeStruct((Mp, Np), out_dtype),
        grid_spec=pltpu.PrefetchScalarGridSpec(
            num_scalar_prefetch=0,
            grid=grid,
            in_specs=[
                pl.BlockSpec((tm, Kp), lambda i, j: (i, 0)),
                pl.BlockSpec((Kp, tn), lambda i, j: (0, j)),
                pl.BlockSpec((1, tn), lambda i, j: (0, j)),
            ],
            out_specs=pl.BlockSpec((tm, tn), lambda i, j: (i, j)),
        ),
        compiler_params=pltpu.CompilerParams(
            dimension_semantics=("parallel", "parallel"),
            vmem_limit_bytes=_VMEM_LIMIT),
    )(a, bmat, bias2d)
    if (Mp, Np) != (M, n_true):
        out = out[:M, :n_true]
    return out


# ---------------------------------------------------------------------------
# ConvTranspose2d(kernel=4, stride=2, padding=1) via sub-pixel decomposition.
# All 4 output-parity phases share ONE im2col A matrix (2x2 windows over a
# 1-padded input); the 4 phases are 4*Cout fused GEMM output columns.
# ---------------------------------------------------------------------------
def _im2col_2x2(x_nhwc):
    N, H, W, Cin = x_nhwc.shape
    xp = jnp.pad(x_nhwc, ((0, 0), (1, 1), (1, 1), (0, 0)))
    parts = [xp[:, dy:dy + H + 1, dx:dx + W + 1, :]
             for dy in range(2) for dx in range(2)]
    return jnp.concatenate(parts, axis=-1).reshape(
        N * (H + 1) * (W + 1), 4 * Cin)


def _subpixel_weights(weight, bias):
    """weight: (Cin, Cout, 4, 4) PyTorch layout -> (4*Cin, 4*Cout) GEMM B."""
    Cin, Cout, KH, KW = weight.shape
    assert KH == 4 and KW == 4
    blocks = []
    for dy in range(2):
        for dx in range(2):
            cols = [weight[:, :, 3 - py - 2 * dy, 3 - px - 2 * dx]
                    for py in range(2) for px in range(2)]
            blocks.append(jnp.concatenate(cols, axis=1))      # (Cin, 4*Cout)
    b_mat = jnp.concatenate(blocks, axis=0)                   # (4*Cin, 4*Cout)
    bias4 = jnp.tile(bias, 4)
    return b_mat, bias4


def deconv_s2k4p1_nhwc(x_nhwc, wd, *, cout, act):
    """Intermediate deconv layers: NHWC in, NHWC (bf16) out."""
    N, H, W, _ = x_nhwc.shape
    a_mat = _im2col_2x2(x_nhwc)
    r = gemm_bias_act(a_mat, wd, n_true=4 * cout, act=act,
                      out_dtype=jnp.bfloat16)
    r = r.reshape(N, H + 1, W + 1, 4, cout)
    rows = []
    for py in range(2):
        cols = [r[:, py:py + H, px:px + W, 2 * py + px, :] for px in range(2)]
        rows.append(jnp.stack(cols, axis=3))                  # (N,H,W,2,cout)
    ph = jnp.stack(rows, axis=3)                              # (N,H,W,2,2,cout)
    return ph.transpose(0, 1, 3, 2, 4, 5).reshape(N, 2 * H, 2 * W, cout)


def deconv3_tanh_nchw(x_nhwc, wd):
    """Final deconv (Cout=3) in transposed, lane-dense form; NCHW f32 out."""
    N, H, W, _ = x_nhwc.shape
    cout = 3
    a_mat = _im2col_2x2(x_nhwc)
    bt, bias_t = wd["bt"], wd["bias"]
    NRp, Kp = bt.shape
    M, K = a_mat.shape
    a = a_mat.astype(jnp.bfloat16)
    tmL = _pick_lane_tile(M)
    Mp = _round_up(M, tmL)
    if (Mp, Kp) != (M, K):
        a = jnp.pad(a, ((0, Mp - M), (0, Kp - K)))

    out_t = pl.pallas_call(
        _gemm_t_bias_tanh_kernel,
        out_shape=jax.ShapeDtypeStruct((NRp, Mp), jnp.float32),
        grid_spec=pltpu.PrefetchScalarGridSpec(
            num_scalar_prefetch=0,
            grid=(Mp // tmL,),
            in_specs=[
                pl.BlockSpec((NRp, Kp), lambda i: (0, 0)),
                pl.BlockSpec((tmL, Kp), lambda i: (i, 0)),
                pl.BlockSpec((NRp, 1), lambda i: (0, 0)),
            ],
            out_specs=pl.BlockSpec((NRp, tmL), lambda i: (0, i)),
        ),
        compiler_params=pltpu.CompilerParams(
            dimension_semantics=("parallel",),
            vmem_limit_bytes=_VMEM_LIMIT),
    )(bt, a, bias_t)

    # Rows are (phase=2*py+px, c); pixel-shuffle straight into NCHW.
    r = out_t[:4 * cout, :M].reshape(2, 2, cout, N, H + 1, W + 1)
    rows = []
    for py in range(2):
        cols = [r[py, px, :, :, py:py + H, px:px + W] for px in range(2)]
        rows.append(jnp.stack(cols, axis=-1))                 # (c,N,H,W,2)
    ph = jnp.stack(rows, axis=3)                              # (c,N,H,2,W,2)
    return ph.transpose(1, 0, 2, 3, 4, 5).reshape(N, cout, 2 * H, 2 * W)


# ---------------------------------------------------------------------------
# Parameters: init (matches PyTorch init_weights) + one-time weight prep
# ---------------------------------------------------------------------------
def init_params(key, ngf):
    std = 0.02
    ks = jax.random.split(key, 4)
    p = {}
    dout = ngf * 4 * 4 * 4
    p["dense_w"] = std * jax.random.normal(ks[0], (dout, 100), jnp.float32)
    p["dense_b"] = jnp.zeros((dout,), jnp.float32)
    deconv_shapes = [
        (ngf * 4, ngf * 2, 4, 4),   # deconv1
        (ngf * 2, ngf, 4, 4),       # deconv2
        (ngf, 3, 4, 4),             # deconv3
    ]
    for i, shp in enumerate(deconv_shapes, start=1):
        p[f"deconv{i}_w"] = std * jax.random.normal(ks[i], shp, jnp.float32)
        p[f"deconv{i}_b"] = jnp.zeros((shp[1],), jnp.float32)
    return p


def _prep_gemm_weights(b_mat, bias):
    K, N = b_mat.shape
    Kp = _round_up(K, 128)
    tn = _pick_lane_tile(N)
    Np = _round_up(N, tn)
    b = jnp.pad(b_mat.astype(jnp.bfloat16), ((0, Kp - K), (0, Np - N)))
    bias2d = jnp.pad(bias.astype(jnp.float32).reshape(1, N),
                     ((0, 0), (0, Np - N)))
    return {"b": b, "bias": bias2d}


def prepare_params(params, ngf):
    """One-time weight-side prep (transpose / sub-pixel repack / bf16 / pad)."""
    prep = {"dense": _prep_gemm_weights(params["dense_w"].T,
                                        params["dense_b"])}
    for i in (1, 2):
        b_mat, bias4 = _subpixel_weights(params[f"deconv{i}_w"],
                                         params[f"deconv{i}_b"])
        prep[f"deconv{i}"] = _prep_gemm_weights(b_mat, bias4)
    # deconv3: transposed formulation (lane-dense output, NCHW-native).
    b_mat, bias4 = _subpixel_weights(params["deconv3_w"], params["deconv3_b"])
    bt = b_mat.T                                   # (12, 4*Cin)
    NR, K = bt.shape
    NRp, Kp = _round_up(NR, 16), _round_up(K, 128)
    bt = jnp.pad(bt.astype(jnp.bfloat16), ((0, NRp - NR), (0, Kp - K)))
    bias_t = jnp.pad(bias4.astype(jnp.float32).reshape(NR, 1),
                     ((0, NRp - NR), (0, 0)))
    prep["deconv3"] = {"bt": bt, "bias": bias_t}
    return prep


def generator_32_forward(prep, z, ngf):
    b = z.shape[0]
    out = gemm_bias_act(z, prep["dense"], n_true=ngf * 4 * 4 * 4, act="relu",
                        out_dtype=jnp.bfloat16)
    # PyTorch reshape is channel-major; go NHWC once (tiny) and stay NHWC.
    out = out.reshape(b, ngf * 4, 4, 4).transpose(0, 2, 3, 1)
    out = deconv_s2k4p1_nhwc(out, prep["deconv1"], cout=ngf * 2, act="relu")
    out = deconv_s2k4p1_nhwc(out, prep["deconv2"], cout=ngf, act="relu")
    return deconv3_tanh_nchw(out, prep["deconv3"])    # (B, 3, 32, 32) f32


# ---------------------------------------------------------------------------
# Pure-XLA f32 reference (correctness check only)
# ---------------------------------------------------------------------------
def _ref_forward(params, z, ngf):
    b = z.shape[0]
    out = jnp.dot(z, params["dense_w"].T,
                  precision=jax.lax.Precision.HIGHEST) + params["dense_b"]
    out = jnp.maximum(out, 0.0)
    out = out.reshape(b, ngf * 4, 4, 4)
    for i in range(1, 4):
        w = params[f"deconv{i}_w"]
        bia = params[f"deconv{i}_b"]
        w_conv = jnp.flip(w, (2, 3)).transpose(1, 0, 2, 3)   # (Cout,Cin,4,4)
        out = jax.lax.conv_general_dilated(
            out, w_conv, window_strides=(1, 1),
            padding=[(2, 2), (2, 2)],
            lhs_dilation=(2, 2),
            dimension_numbers=("NCHW", "OIHW", "NCHW"),
            precision=jax.lax.Precision.HIGHEST)
        out = out + bia[None, :, None, None]
        out = jnp.maximum(out, 0.0) if i < 3 else jnp.tanh(out)
    return out


if __name__ == "__main__":
    ngf = 16      # small ngf for the demo (module default is 128); same graph
    batch = 2
    root = jax.random.PRNGKey(0)
    k_z, k_p = jax.random.split(root)
    z = jax.random.normal(k_z, (batch, 100), jnp.float32)
    params = init_params(k_p, ngf)

    prep = prepare_params(params, ngf)          # one-time weight-side prep
    fwd = jax.jit(generator_32_forward, static_argnums=(2,))
    out = jax.block_until_ready(fwd(prep, z, ngf))
    assert out.shape == (batch, 3, 32, 32), out.shape

    ref_fn = jax.jit(_ref_forward, static_argnums=(2,))
    ref = jax.block_until_ready(ref_fn(params, z, ngf))
    np.testing.assert_allclose(np.asarray(out), np.asarray(ref),
                               rtol=2e-2, atol=2e-3)
    print("KERNEL_OK")
</pallas_src>

<mosaic_0001>
module attributes {stable_mosaic.version = 11 : i64} {
  func.func @_gemm_bias_act_kernel(%arg0: i32, %arg1: i32, %arg2: memref<16x128xbf16, #tpu.memory_space<vmem>>, %arg3: memref<128x512xbf16, #tpu.memory_space<vmem>>, %arg4: memref<1x512xf32, #tpu.memory_space<vmem>>, %arg5: memref<16x512xbf16, #tpu.memory_space<vmem>>) attributes {dimension_semantics = [#tpu.dimension_semantics<parallel>, #tpu.dimension_semantics<parallel>], iteration_bounds = array<i64: 1, 2>, scalar_prefetch = 0 : i64, scratch_operands = 0 : i64, tpu.core_type = #tpu.core_type<tc>, window_params = [{transform_indices = @transform_0, window_bounds = array<i64: 16, 128>}, {transform_indices = @transform_1, window_bounds = array<i64: 128, 512>}, {transform_indices = @transform_2, window_bounds = array<i64: 1, 512>}, {transform_indices = @transform_3, window_bounds = array<i64: 16, 512>}]} {
    %c0 = arith.constant 0 : index
    %c0_0 = arith.constant 0 : index
    %0 = vector.load %arg2[%c0, %c0_0] : memref<16x128xbf16, #tpu.memory_space<vmem>>, vector<16x128xbf16>
    %c0_1 = arith.constant 0 : index
    %c0_2 = arith.constant 0 : index
    %1 = vector.load %arg3[%c0_1, %c0_2] : memref<128x512xbf16, #tpu.memory_space<vmem>>, vector<128x512xbf16>
    %cst = arith.constant dense<0.000000e+00> : vector<16x512xf32>
    %2 = tpu.matmul %0, %1, %cst {dimension_numbers = #tpu.dot_dimension_numbers<[1], [0], [0], [1], [0, 0, 1, 1], [], []>} : vector<16x128xbf16>, vector<128x512xbf16>, vector<16x512xf32> -> vector<16x512xf32>
    %c0_3 = arith.constant 0 : index
    %c0_4 = arith.constant 0 : index
    %3 = vector.load %arg4[%c0_3, %c0_4] : memref<1x512xf32, #tpu.memory_space<vmem>>, vector<1x512xf32>
    %4 = vector.broadcast %3 : vector<1x512xf32> to vector<16x512xf32>
    %5 = arith.addf %2, %4 : vector<16x512xf32>
    %cst_5 = arith.constant 0.000000e+00 : f32
    %6 = vector.broadcast %cst_5 : f32 to vector<16x512xf32>
    %7 = arith.maximumf %5, %6 : vector<16x512xf32>
    %8 = arith.truncf %7 : vector<16x512xf32> to vector<16x512xbf16>
    %c0_6 = arith.constant 0 : index
    %c0_7 = arith.constant 0 : index
    %9 = vector.load %arg5[%c0_6, %c0_7] : memref<16x512xbf16, #tpu.memory_space<vmem>>, vector<16x512xbf16>
    tpu.vector_store %arg5[%c0_6, %c0_7], %8 {strides = array<i32>} : memref<16x512xbf16, #tpu.memory_space<vmem>>, vector<16x512xbf16>,
    return
  }
  func.func @transform_0(%arg0: i32, %arg1: i32) -> (i32, i32) {
    %c0_i32 = arith.constant 0 : i32
    %c0_i32_0 = arith.constant 0 : i32
    return %arg0, %c0_i32 : i32, i32
  }
  func.func @transform_1(%arg0: i32, %arg1: i32) -> (i32, i32) {
    %c0_i32 = arith.constant 0 : i32
    %c0_i32_0 = arith.constant 0 : i32
    return %c0_i32, %arg1 : i32, i32
  }
  func.func @transform_2(%arg0: i32, %arg1: i32) -> (i32, i32) {
    %c0_i32 = arith.constant 0 : i32
    %c0_i32_0 = arith.constant 0 : i32
    return %c0_i32, %arg1 : i32, i32
  }
  func.func @transform_3(%arg0: i32, %arg1: i32) -> (i32, i32) {
    %c0_i32 = arith.constant 0 : i32
    return %arg0, %arg1 : i32, i32
  }
}

module attributes {stable_mosaic.version = 11 : i64} {
  func.func @_gemm_bias_act_kernel(%arg0: i32, %arg1: i32, %arg2: memref<64x256xbf16, #tpu.memory_space<vmem>>, %arg3: memref<256x128xbf16, #tpu.memory_space<vmem>>, %arg4: memref<1x128xf32, #tpu.memory_space<vmem>>, %arg5: memref<64x128xbf16, #tpu.memory_space<vmem>>) attributes {dimension_semantics = [#tpu.dimension_semantics<parallel>, #tpu.dimension_semantics<parallel>], iteration_bounds = array<i64: 1, 1>, scalar_prefetch = 0 : i64, scratch_operands = 0 : i64, tpu.core_type = #tpu.core_type<tc>, window_params = [{transform_indices = @transform_0, window_bounds = array<i64: 64, 256>}, {transform_indices = @transform_1, window_bounds = array<i64: 256, 128>}, {transform_indices = @transform_2, window_bounds = array<i64: 1, 128>}, {transform_indices = @transform_3, window_bounds = array<i64: 64, 128>}]} {
    %c0 = arith.constant 0 : index
    %c0_0 = arith.constant 0 : index
    %0 = vector.load %arg2[%c0, %c0_0] : memref<64x256xbf16, #tpu.memory_space<vmem>>, vector<64x256xbf16>
    %c0_1 = arith.constant 0 : index
    %c0_2 = arith.constant 0 : index
    %1 = vector.load %arg3[%c0_1, %c0_2] : memref<256x128xbf16, #tpu.memory_space<vmem>>, vector<256x128xbf16>
    %cst = arith.constant dense<0.000000e+00> : vector<64x128xf32>
    %2 = tpu.matmul %0, %1, %cst {dimension_numbers = #tpu.dot_dimension_numbers<[1], [0], [0], [1], [0, 0, 1, 1], [], []>} : vector<64x256xbf16>, vector<256x128xbf16>, vector<64x128xf32> -> vector<64x128xf32>
    %c0_3 = arith.constant 0 : index
    %c0_4 = arith.constant 0 : index
    %3 = vector.load %arg4[%c0_3, %c0_4] : memref<1x128xf32, #tpu.memory_space<vmem>>, vector<1x128xf32>
    %4 = vector.broadcast %3 : vector<1x128xf32> to vector<64x128xf32>
    %5 = arith.addf %2, %4 : vector<64x128xf32>
    %cst_5 = arith.constant 0.000000e+00 : f32
    %6 = vector.broadcast %cst_5 : f32 to vector<64x128xf32>
    %7 = arith.maximumf %5, %6 : vector<64x128xf32>
    %8 = arith.truncf %7 : vector<64x128xf32> to vector<64x128xbf16>
    %c0_6 = arith.constant 0 : index
    %c0_7 = arith.constant 0 : index
    %9 = vector.load %arg5[%c0_6, %c0_7] : memref<64x128xbf16, #tpu.memory_space<vmem>>, vector<64x128xbf16>
    tpu.vector_store %arg5[%c0_6, %c0_7], %8 {strides = array<i32>} : memref<64x128xbf16, #tpu.memory_space<vmem>>, vector<64x128xbf16>,
    return
  }
  func.func @transform_0(%arg0: i32, %arg1: i32) -> (i32, i32) {
    %c0_i32 = arith.constant 0 : i32
    %c0_i32_0 = arith.constant 0 : i32
    return %arg0, %c0_i32 : i32, i32
  }
  func.func @transform_1(%arg0: i32, %arg1: i32) -> (i32, i32) {
    %c0_i32 = arith.constant 0 : i32
    %c0_i32_0 = arith.constant 0 : i32
    return %c0_i32, %arg1 : i32, i32
  }
  func.func @transform_2(%arg0: i32, %arg1: i32) -> (i32, i32) {
    %c0_i32 = arith.constant 0 : i32
    %c0_i32_0 = arith.constant 0 : i32
    return %c0_i32, %arg1 : i32, i32
  }
  func.func @transform_3(%arg0: i32, %arg1: i32) -> (i32, i32) {
    %c0_i32 = arith.constant 0 : i32
    return %arg0, %arg1 : i32, i32
  }
}

module attributes {stable_mosaic.version = 11 : i64} {
  func.func @_gemm_bias_act_kernel(%arg0: i32, %arg1: i32, %arg2: memref<176x128xbf16, #tpu.memory_space<vmem>>, %arg3: memref<128x128xbf16, #tpu.memory_space<vmem>>, %arg4: memref<1x128xf32, #tpu.memory_space<vmem>>, %arg5: memref<176x128xbf16, #tpu.memory_space<vmem>>) attributes {dimension_semantics = [#tpu.dimension_semantics<parallel>, #tpu.dimension_semantics<parallel>], iteration_bounds = array<i64: 1, 1>, scalar_prefetch = 0 : i64, scratch_operands = 0 : i64, tpu.core_type = #tpu.core_type<tc>, window_params = [{transform_indices = @transform_0, window_bounds = array<i64: 176, 128>}, {transform_indices = @transform_1, window_bounds = array<i64: 128, 128>}, {transform_indices = @transform_2, window_bounds = array<i64: 1, 128>}, {transform_indices = @transform_3, window_bounds = array<i64: 176, 128>}]} {
    %c0 = arith.constant 0 : index
    %c0_0 = arith.constant 0 : index
    %0 = vector.load %arg2[%c0, %c0_0] : memref<176x128xbf16, #tpu.memory_space<vmem>>, vector<176x128xbf16>
    %c0_1 = arith.constant 0 : index
    %c0_2 = arith.constant 0 : index
    %1 = vector.load %arg3[%c0_1, %c0_2] : memref<128x128xbf16, #tpu.memory_space<vmem>>, vector<128x128xbf16>
    %cst = arith.constant dense<0.000000e+00> : vector<176x128xf32>
    %2 = tpu.matmul %0, %1, %cst {dimension_numbers = #tpu.dot_dimension_numbers<[1], [0], [0], [1], [0, 0, 1, 1], [], []>} : vector<176x128xbf16>, vector<128x128xbf16>, vector<176x128xf32> -> vector<176x128xf32>
    %c0_3 = arith.constant 0 : index
    %c0_4 = arith.constant 0 : index
    %3 = vector.load %arg4[%c0_3, %c0_4] : memref<1x128xf32, #tpu.memory_space<vmem>>, vector<1x128xf32>
    %4 = vector.broadcast %3 : vector<1x128xf32> to vector<176x128xf32>
    %5 = arith.addf %2, %4 : vector<176x128xf32>
    %cst_5 = arith.constant 0.000000e+00 : f32
    %6 = vector.broadcast %cst_5 : f32 to vector<176x128xf32>
    %7 = arith.maximumf %5, %6 : vector<176x128xf32>
    %8 = arith.truncf %7 : vector<176x128xf32> to vector<176x128xbf16>
    %c0_6 = arith.constant 0 : index
    %c0_7 = arith.constant 0 : index
    %9 = vector.load %arg5[%c0_6, %c0_7] : memref<176x128xbf16, #tpu.memory_space<vmem>>, vector<176x128xbf16>
    tpu.vector_store %arg5[%c0_6, %c0_7], %8 {strides = array<i32>} : memref<176x128xbf16, #tpu.memory_space<vmem>>, vector<176x128xbf16>,
    return
  }
  func.func @transform_0(%arg0: i32, %arg1: i32) -> (i32, i32) {
    %c0_i32 = arith.constant 0 : i32
    %c0_i32_0 = arith.constant 0 : i32
    return %arg0, %c0_i32 : i32, i32
  }
  func.func @transform_1(%arg0: i32, %arg1: i32) -> (i32, i32) {
    %c0_i32 = arith.constant 0 : i32
    %c0_i32_0 = arith.constant 0 : i32
    return %c0_i32, %arg1 : i32, i32
  }
  func.func @transform_2(%arg0: i32, %arg1: i32) -> (i32, i32) {
    %c0_i32 = arith.constant 0 : i32
    %c0_i32_0 = arith.constant 0 : i32
    return %c0_i32, %arg1 : i32, i32
  }
  func.func @transform_3(%arg0: i32, %arg1: i32) -> (i32, i32) {
    %c0_i32 = arith.constant 0 : i32
    return %arg0, %arg1 : i32, i32
  }
}

module attributes {stable_mosaic.version = 11 : i64} {
  func.func @_gemm_t_bias_tanh_kernel(%arg0: i32, %arg1: memref<16x128xbf16, #tpu.memory_space<vmem>>, %arg2: memref<384x128xbf16, #tpu.memory_space<vmem>>, %arg3: memref<16x1xf32, #tpu.memory_space<vmem>>, %arg4: memref<16x384xf32, #tpu.memory_space<vmem>>) attributes {dimension_semantics = [#tpu.dimension_semantics<parallel>], iteration_bounds = array<i64: 2>, scalar_prefetch = 0 : i64, scratch_operands = 0 : i64, tpu.core_type = #tpu.core_type<tc>, window_params = [{pipeline_mode = #tpu.pipeline_mode<synchronous>, transform_indices = @transform_0, window_bounds = array<i64: 16, 128>}, {transform_indices = @transform_1, window_bounds = array<i64: 384, 128>}, {pipeline_mode = #tpu.pipeline_mode<synchronous>, transform_indices = @transform_2, window_bounds = array<i64: 16, 1>}, {transform_indices = @transform_3, window_bounds = array<i64: 16, 384>}]} {
    %c0 = arith.constant 0 : index
    %c0_0 = arith.constant 0 : index
    %0 = vector.load %arg1[%c0, %c0_0] : memref<16x128xbf16, #tpu.memory_space<vmem>>, vector<16x128xbf16>
    %c0_1 = arith.constant 0 : index
    %c0_2 = arith.constant 0 : index
    %1 = vector.load %arg2[%c0_1, %c0_2] : memref<384x128xbf16, #tpu.memory_space<vmem>>, vector<384x128xbf16>
    %cst = arith.constant dense<0.000000e+00> : vector<16x384xf32>
    %2 = tpu.matmul %0, %1, %cst {dimension_numbers = #tpu.dot_dimension_numbers<[1], [1], [0], [0], [0, 0, 1, 0], [], []>} : vector<16x128xbf16>, vector<384x128xbf16>, vector<16x384xf32> -> vector<16x384xf32>
    %c0_3 = arith.constant 0 : index
    %c0_4 = arith.constant 0 : index
    %3 = vector.load %arg3[%c0_3, %c0_4] : memref<16x1xf32, #tpu.memory_space<vmem>>, vector<16x1xf32>
    %4 = vector.broadcast %3 : vector<16x1xf32> to vector<16x384xf32>
    %5 = arith.addf %2, %4 : vector<16x384xf32>
    %6 = math.tanh %5 : vector<16x384xf32>
    %c0_5 = arith.constant 0 : index
    %c0_6 = arith.constant 0 : index
    %7 = vector.load %arg4[%c0_5, %c0_6] : memref<16x384xf32, #tpu.memory_space<vmem>>, vector<16x384xf32>
    tpu.vector_store %arg4[%c0_5, %c0_6], %6 {strides = array<i32>} : memref<16x384xf32, #tpu.memory_space<vmem>>, vector<16x384xf32>,
    return
  }
  func.func @transform_0(%arg0: i32) -> (i32, i32) {
    %c0_i32 = arith.constant 0 : i32
    %c0_i32_0 = arith.constant 0 : i32
    %c0_i32_1 = arith.constant 0 : i32
    return %c0_i32, %c0_i32_0 : i32, i32
  }
  func.func @transform_1(%arg0: i32) -> (i32, i32) {
    %c0_i32 = arith.constant 0 : i32
    %c0_i32_0 = arith.constant 0 : i32
    return %arg0, %c0_i32 : i32, i32
  }
  func.func @transform_2(%arg0: i32) -> (i32, i32) {
    %c0_i32 = arith.constant 0 : i32
    %c0_i32_0 = arith.constant 0 : i32
    %c0_i32_1 = arith.constant 0 : i32
    return %c0_i32, %c0_i32_0 : i32, i32
  }
  func.func @transform_3(%arg0: i32) -> (i32, i32) {
    %c0_i32 = arith.constant 0 : i32
    %c0_i32_0 = arith.constant 0 : i32
    return %c0_i32, %arg0 : i32, i32
  }
}

</mosaic_0001>

<llo_original>
// kernel: generator_32_forward.4
$region0: #{generator_32_forward.4}
  #allocation0 [shape = 'u32[]', space=smem, size = 0x4, offset = 0x4, fixed_abs, tag = 'smem constant byte address 0x4 - core index']
  #allocation1 [shape = 'u32[72,128]{1,0:T(1,128)}', space=vmem, size = 0x9000, scoped, tag = 'internal scratch']
  %s0 = inlined_call_operand.vmem [shape: bf16[16,128], index: 0, kind: input, shape index: {}]
  %s1 = inlined_call_operand.hbm [shape: bf16[128,1024], index: 1, kind: input, shape index: {}]
  %s2 = inlined_call_operand.hbm [shape: f32[1,1024], index: 2, kind: input, shape index: {}]
  %s3 = inlined_call_operand.vmem [shape: bf16[16,1024], index: 3, kind: output, shape index: {}]
  %s4 = sld [smem:[#allocation0]]
  $region72: #{generator_32_forward.4} parent=0
    _
  %s6 = ssub.s32 1, %s4
  %s7 = scalar_select 0, %s6, %s4
  $region1: #{generator_32_forward.4} parent=0
    #allocation2 [shape = 'u8[262144]{0}', space=vmem, size = 0x40000, scoped, tag = 'input window, operand 1']
    #allocation3 [shape = 's32[2]{0}', space=sflag, size = 0x8, scoped, tag = 'scoped memory for generator_32_forward.4']
    #allocation4 [shape = 'u8[4096]{0}', space=vmem, size = 0x1000, scoped, tag = 'input window, operand 2']
    #allocation5 [shape = 's32[2]{0}', space=sflag, size = 0x8, scoped, tag = 'scoped memory for generator_32_forward.4']
    #allocation6 [shape = 'u8[32768]{0}', space=vmem, size = 0x8000, scoped, tag = 'output window, operand 0']
    %8 = vsyncpa [#allocation3], 0
    %s9 = scalar_lea.sflag [#allocation3], 1
    %10 = vsyncpa %s9, 0
    %11 = vsyncpa [#allocation5], 0
    %s12 = scalar_lea.sflag [#allocation5], 1
    %13 = vsyncpa %s12, 0
    loop: start=0, step=1, limit=4
    $region2: #{generator_32_forward.4} parent=1 // loop_pre_header
      _
    $region3: #{generator_32_forward.4} parent=1 // loop_header
      %s15 = sphi 0, %s19
      %p16 = scmp.ge.s32.totalorder %s15, 4
      %s22 = sphi 0, %s34
      %s23 = sphi 0, %s30
      %s24 = sphi 0, %s22
      %s25 = sphi 0, %s23
      %s26 = sphi 0, %s24
      %s27 = sphi 0, %s25
      %s37 = sphi 0, %s39
      %s40 = sphi 0, %s37
      %s41 = sphi 0, %s40
      %s57 = sphi 0, %s41
      %s63 = sphi 0, %s65
      %s66 = sphi 0, %s63
      %s67 = sphi 0, %s66
      %s83 = sphi 0, %s67
      %s89 = sphi 0, %s91
      %s92 = sphi 0, %s89
      %s93 = sphi 0, %s92
      %s109 = sphi 0, %s93
      %s117 = sphi 0, %s119
      %s120 = sphi 0, %s117
      %s121 = sphi 0, %s120
      %s137 = sphi 0, %s121
    $region4: #{generator_32_forward.4} parent=1 // loop_header_branch
      %18 = sbr.rel (%p16) target = $region8
    $region5: #{generator_32_forward.4} parent=1 // loop_body
      %s20 = ssub.s32 %s15, 1
      %s21 = ssub.s32 %s15, 2
      %s28 = sadd.s32 1, %s23
      %p29 = scmp.ge.s32.totalorder %s28, 2
      %s30 = scalar_select %p29, 0, %s28
      %s31 = sadd.s32 1, %s22
      %s32 = scalar_select %p29, %s31, %s22
      %p33 = scmp.ge.s32.totalorder %s32, 1
      %s34 = scalar_select %p33, 0, %s32
      %s35 = ssub.s32 %s22, %s34
      %p36 = scmp.eq.s32.totalorder %s35, 0
      %s38 = sadd.s32 %s37, 1
      %s39 = scalar_select %p36, %s37, %s38
      %p42 = pneg %p36
      %p43 = scmp.eq.s32.totalorder %s15, 1
      %p44 = por %p42, %p43
      %p45 = scmp.ne.s32.totalorder %s37, %s40
      %p46 = scmp.eq.s32.totalorder %s15, 0
      %p47 = por %p45, %p46
      %p48 = scmp.ne.s32.totalorder %s37, %s40
      %p49 = scmp.eq.s32.totalorder %s20, 1
      %p50 = por %p48, %p49
      %p51 = scmp.ne.s32.totalorder %s40, %s41
      %p52 = scmp.eq.s32.totalorder %s20, 0
      %p53 = por %p51, %p52
      %p54 = scmp.ne.s32.totalorder %s40, %s41
      %p55 = scmp.eq.s32.totalorder %s21, 1
      %p56 = por %p54, %p55
      %p58 = scmp.ne.s32.totalorder %s41, %s57
      %p59 = scmp.eq.s32.totalorder %s21, 0
      %p60 = por %p58, %p59
      %s61 = ssub.s32 %s23, %s30
      %p62 = scmp.eq.s32.totalorder %s61, 0
      %s64 = sadd.s32 %s63, 1
      %s65 = scalar_select %p62, %s63, %s64
      %p68 = pneg %p62
      %p69 = scmp.eq.s32.totalorder %s15, 1
      %p70 = por %p68, %p69
      %p71 = scmp.ne.s32.totalorder %s63, %s66
      %p72 = scmp.eq.s32.totalorder %s15, 0
      %p73 = por %p71, %p72
      %p74 = scmp.ne.s32.totalorder %s63, %s66
      %p75 = scmp.eq.s32.totalorder %s20, 1
      %p76 = por %p74, %p75
      %p77 = scmp.ne.s32.totalorder %s66, %s67
      %p78 = scmp.eq.s32.totalorder %s20, 0
      %p79 = por %p77, %p78
      %p80 = scmp.ne.s32.totalorder %s66, %s67
      %p81 = scmp.eq.s32.totalorder %s21, 1
      %p82 = por %p80, %p81
      %p84 = scmp.ne.s32.totalorder %s67, %s83
      %p85 = scmp.eq.s32.totalorder %s21, 0
      %p86 = por %p84, %p85
      %s87 = ssub.s32 %s23, %s30
      %p88 = scmp.eq.s32.totalorder %s87, 0
      %s90 = sadd.s32 %s89, 1
      %s91 = scalar_select %p88, %s89, %s90
      %p94 = pneg %p88
      %p95 = scmp.eq.s32.totalorder %s15, 1
      %p96 = por %p94, %p95
      %p97 = scmp.ne.s32.totalorder %s89, %s92
      %p98 = scmp.eq.s32.totalorder %s15, 0
      %p99 = por %p97, %p98
      %p100 = scmp.ne.s32.totalorder %s89, %s92
      %p101 = scmp.eq.s32.totalorder %s20, 1
      %p102 = por %p100, %p101
      %p103 = scmp.ne.s32.totalorder %s92, %s93
      %p104 = scmp.eq.s32.totalorder %s20, 0
      %p105 = por %p103, %p104
      %p106 = scmp.ne.s32.totalorder %s92, %s93
      %p107 = scmp.eq.s32.totalorder %s21, 1
      %p108 = por %p106, %p107
      %p110 = scmp.ne.s32.totalorder %s93, %s109
      %p111 = scmp.eq.s32.totalorder %s21, 0
      %p112 = por %p110, %p111
      %s113 = ssub.s32 %s22, %s34
      %s114 = ssub.s32 %s23, %s30
      %s115 = sor.u32 %s113, %s114
      %p116 = scmp.eq.s32.totalorder %s115, 0
      %s118 = sadd.s32 %s117, 1
      %s119 = scalar_select %p116, %s117, %s118
      %p122 = pneg %p116
      %p123 = scmp.eq.s32.totalorder %s15, 1
      %p124 = por %p122, %p123
      %p125 = scmp.ne.s32.totalorder %s117, %s120
      %p126 = scmp.eq.s32.totalorder %s15, 0
      %p127 = por %p125, %p126
      %p128 = scmp.ne.s32.totalorder %s117, %s120
      %p129 = scmp.eq.s32.totalorder %s20, 1
      %p130 = por %p128, %p129
      %p131 = scmp.ne.s32.totalorder %s120, %s121
      %p132 = scmp.eq.s32.totalorder %s20, 0
      %p133 = por %p131, %p132
      %p134 = scmp.ne.s32.totalorder %s120, %s121
      %p135 = scmp.eq.s32.totalorder %s21, 1
      %p136 = por %p134, %p135
      %p138 = scmp.ne.s32.totalorder %s121, %s137
      %p139 = scmp.eq.s32.totalorder %s21, 0
      %p140 = por %p138, %p139
      %p141 = scmp.le.s32.totalorder 1, %s15
      %p142 = scmp.lt.s32.totalorder %s15, 3
      %p143 = pnand %p141, %p142
      %p144 = pneg %p143
      // Predicated region
      $region9: #{generator_32_forward.4} parent=5 // pred_check
        _
      $region10: #{generator_32_forward.4} parent=5 // pred_check_branch
        %146 = sbr.rel (%p143) target = $region12
      $region11: #{generator_32_forward.4} parent=5 // pred_region
        %s147 = ssub.s32 %s15, 1
        // Predicated region
        $region13: #{generator_32_forward.4} parent=11 // pred_check
          %p148 = pneg %p53
        $region14: #{generator_32_forward.4} parent=11 // pred_check_branch
          %150 = sbr.rel (%p148) target = $region16
        $region15: #{generator_32_forward.4} parent=11 // pred_region
          %s151 = smul.u32 2, %s24
          %p152 = scmp.lt.s32.totalorder %s151, 1
          %s153 = scalar_select %p152, %s151, 1
          %s154 = smul.addr %s153, 4
          %s155 = scalar_lea.vmem %s0, %s154
          %s156 = smul.u32 2, %s24
        $region16: #{generator_32_forward.4} parent=11 // pred_fallthru
          _
      $region12: #{generator_32_forward.4} parent=5 // pred_fallthru
        _
      %p157 = scmp.lt.s32.totalorder %s15, 2
      // Predicated region
      $region17: #{generator_32_forward.4} parent=5 // pred_check
        %p158 = pneg %p157
      $region18: #{generator_32_forward.4} parent=5 // pred_check_branch
        %160 = sbr.rel (%p158) target = $region20
      $region19: #{generator_32_forward.4} parent=5 // pred_region
        // Predicated region
        $region21: #{generator_32_forward.4} parent=19 // pred_check
          %p161 = pneg %p73
        $region22: #{generator_32_forward.4} parent=19 // pred_check_branch
          %163 = sbr.rel (%p161) target = $region24
        $region23: #{generator_32_forward.4} parent=19 // pred_region
          %s164 = sand.u32 %s63, 1
          %s165 = scalar_lea.sflag [#allocation3], %s164
          %s166 = sand.u32 %s63, 1
          %s167 = smul.addr %s166, 256
          %s168 = scalar_lea.vmem [#allocation2], %s167
          %s169 = smul.u32 4, %s23
          %171 = vsyncadd %s165, 0
          %s172 = smul.addr %s169, 4
          %s173 = scalar_lea.hbm %s1, %s172
          %s174 = sshll.u32 %s173, 4
          %s175 = int_to_ptr.hbm [resolvable:$true] %s174
          %s176 = sshll.u32 %s168, 4
          %s177 = int_to_ptr.vmem [resolvable:$true] %s176
          %182 = dma.hbm_to_vmem [thread:$0]  %s175, 4096, %s177, %s165, 512, 256, 16
        $region24: #{generator_32_forward.4} parent=19 // pred_fallthru
          _
        // Predicated region
        $region25: #{generator_32_forward.4} parent=19 // pred_check
          %p183 = pneg %p99
        $region26: #{generator_32_forward.4} parent=19 // pred_check_branch
          %185 = sbr.rel (%p183) target = $region28
        $region27: #{generator_32_forward.4} parent=19 // pred_region
          %s186 = sand.u32 %s89, 1
          %s187 = scalar_lea.sflag [#allocation5], %s186
          %s188 = sand.u32 %s89, 1
          %s189 = smul.addr %s188, 4
          %s190 = scalar_lea.vmem [#allocation4], %s189
          %s191 = smul.u32 4, %s23
          %193 = vsyncadd %s187, 0
          %s194 = scalar_lea.hbm %s2, %s191
          %s196 = sshll.u32 %s194, 4
          %s197 = int_to_ptr.hbm [resolvable:$true] %s196
          %s198 = sshll.u32 %s190, 4
          %s199 = int_to_ptr.vmem [resolvable:$true] %s198
          %201 = dma.hbm_to_vmem [thread:$0]  %s197, 64, %s199, %s187
        $region28: #{generator_32_forward.4} parent=19 // pred_fallthru
          _
      $region20: #{generator_32_forward.4} parent=5 // pred_fallthru
        _
      %p202 = scmp.le.s32.totalorder 1, %s15
      %p203 = scmp.lt.s32.totalorder %s15, 3
      %p204 = pnand %p202, %p203
      %p205 = pneg %p204
      // Predicated region
      $region29: #{generator_32_forward.4} parent=5 // pred_check
        _
      $region30: #{generator_32_forward.4} parent=5 // pred_check_branch
        %207 = sbr.rel (%p204) target = $region32
      $region31: #{generator_32_forward.4} parent=5 // pred_region
        %s208 = ssub.s32 %s15, 1
        %s209 = sand.u32 %s66, 1
        %s210 = scalar_lea.sflag [#allocation3], %s209
        %s211 = sand.u32 %s66, 1
        %s212 = smul.addr %s211, 256
        %s213 = scalar_lea.vmem [#allocation2], %s212
        // Predicated region
        $region33: #{generator_32_forward.4} parent=31 // pred_check
          %p214 = pneg %p79
        $region34: #{generator_32_forward.4} parent=31 // pred_check_branch
          %216 = sbr.rel (%p214) target = $region36
        $region35: #{generator_32_forward.4} parent=31 // pred_region
          %218 = dma.done %s210, 4096
        $region36: #{generator_32_forward.4} parent=31 // pred_fallthru
          _
        %s219 = sand.u32 %s92, 1
        %s220 = scalar_lea.sflag [#allocation5], %s219
        %s221 = sand.u32 %s92, 1
        %s222 = smul.addr %s221, 4
        %s223 = scalar_lea.vmem [#allocation4], %s222
        // Predicated region
        $region37: #{generator_32_forward.4} parent=31 // pred_check
          %p224 = pneg %p105
        $region38: #{generator_32_forward.4} parent=31 // pred_check_branch
          %226 = sbr.rel (%p224) target = $region40
        $region39: #{generator_32_forward.4} parent=31 // pred_region
          %228 = dma.done %s220, 64
        $region40: #{generator_32_forward.4} parent=31 // pred_fallthru
          _
        %s229 = smul.u32 2, %s24
        %p230 = scmp.lt.s32.totalorder %s229, 1
        %s231 = scalar_select %p230, %s229, 1
        %s232 = smul.addr %s231, 4
        %s233 = scalar_lea.vmem %s0, %s232
        %p234 = pneg %p53
        %p235 = pneg %p50
        %s236 = sand.u32 %s66, 1
        %s237 = scalar_lea.sflag [#allocation3], %s236
        %s238 = sand.u32 %s66, 1
        %s239 = smul.addr %s238, 256
        %s240 = scalar_lea.vmem [#allocation2], %s239
        %p241 = pneg %p79
        %p242 = pneg %p76
        %s243 = sand.u32 %s92, 1
        %s244 = scalar_lea.sflag [#allocation5], %s243
        %s245 = sand.u32 %s92, 1
        %s246 = smul.addr %s245, 4
        %s247 = scalar_lea.vmem [#allocation4], %s246
        %p248 = pneg %p105
        %p249 = pneg %p102
        %p250 = pneg %p133
        %p251 = pneg %p130
        %s252 = sand.u32 %s120, 1
        %s253 = sand.u32 %s120, 1
        %s254 = smul.addr %s253, 32
        %s255 = scalar_lea.vmem [#allocation6], %s254
        %s256 = smul.u32 2, %s24
        %p257 = scmp.lt.s32.totalorder %s256, 1
        %s258 = scalar_select %p257, %s256, 1
        %s259 = smul.addr %s258, 4
        %s260 = scalar_lea.vmem %s0, %s259
        %s261 = smul.u32 2, %s24
        %s262 = smul.u32 4, %s25
        %s263 = smul.u32 4, %s25
        %s264 = smul.u32 2, %s24
        %s265 = smul.u32 4, %s25
        %v266 = vld [vmem:[%s260] sm:$0xf]
        %v267 = vld [vmem:[%s260 + $0x4] sm:$0xf]
        %v268 = vld [vmem:[%s213] sm:$0xff]
        %v269 = vld [vmem:[%s213 + $0x8] sm:$0xff]
        %v270 = vld [vmem:[%s213 + $0x10] sm:$0xff]
        %v271 = vld [vmem:[%s213 + $0x18] sm:$0xff]
        %v272 = vld [vmem:[%s213 + $0x20] sm:$0xff]
        %v273 = vld [vmem:[%s213 + $0x28] sm:$0xff]
        %v274 = vld [vmem:[%s213 + $0x30] sm:$0xff]
        %v275 = vld [vmem:[%s213 + $0x38] sm:$0xff]
        %v276 = vld [vmem:[%s213 + $0x40] sm:$0xff]
        %v277 = vld [vmem:[%s213 + $0x48] sm:$0xff]
        %v278 = vld [vmem:[%s213 + $0x50] sm:$0xff]
        %v279 = vld [vmem:[%s213 + $0x58] sm:$0xff]
        %v280 = vld [vmem:[%s213 + $0x60] sm:$0xff]
        %v281 = vld [vmem:[%s213 + $0x68] sm:$0xff]
        %v282 = vld [vmem:[%s213 + $0x70] sm:$0xff]
        %v283 = vld [vmem:[%s213 + $0x78] sm:$0xff]
        %v284 = vld [vmem:[%s213 + $0x80] sm:$0xff]
        %v285 = vld [vmem:[%s213 + $0x88] sm:$0xff]
        %v286 = vld [vmem:[%s213 + $0x90] sm:$0xff]
        %v287 = vld [vmem:[%s213 + $0x98] sm:$0xff]
        %v288 = vld [vmem:[%s213 + $0xa0] sm:$0xff]
        %v289 = vld [vmem:[%s213 + $0xa8] sm:$0xff]
        %v290 = vld [vmem:[%s213 + $0xb0] sm:$0xff]
        %v291 = vld [vmem:[%s213 + $0xb8] sm:$0xff]
        %v292 = vld [vmem:[%s213 + $0xc0] sm:$0xff]
        %v293 = vld [vmem:[%s213 + $0xc8] sm:$0xff]
        %v294 = vld [vmem:[%s213 + $0xd0] sm:$0xff]
        %v295 = vld [vmem:[%s213 + $0xd8] sm:$0xff]
        %v296 = vld [vmem:[%s213 + $0xe0] sm:$0xff]
        %v297 = vld [vmem:[%s213 + $0xe8] sm:$0xff]
        %v298 = vld [vmem:[%s213 + $0xf0] sm:$0xff]
        %v299 = vld [vmem:[%s213 + $0xf8] sm:$0xff]
        %v300 = vld [vmem:[%s223] sm:$0xf]
        %v302 = vperm.slane %v300, 0
        %v303 = vperm.slane %v300, 1
        %v304 = vperm.slane %v300, 2
        %v305 = vperm.slane %v300, 3
        %v312 = vunpack.c.l.b16 %v266
        %v313 = vunpack.c.l.b16 %v267
        %v314 = vpack.c.b16 %v313, %v312
        %v348 = vunpack.c.l.b16 %v268
        %v349 = vunpack.c.h.b16 %v268
        %v350 = vunpack.c.l.b16 %v269
        %v351 = vunpack.c.h.b16 %v269
        %v352 = vunpack.c.l.b16 %v270
        %v353 = vunpack.c.h.b16 %v270
        %v354 = vunpack.c.l.b16 %v271
        %v355 = vunpack.c.h.b16 %v271
        %v356 = vunpack.c.l.b16 %v272
        %v357 = vunpack.c.h.b16 %v272
        %v358 = vunpack.c.l.b16 %v273
        %v359 = vunpack.c.h.b16 %v273
        %v360 = vunpack.c.l.b16 %v274
        %v361 = vunpack.c.h.b16 %v274
        %v362 = vunpack.c.l.b16 %v275
        %v363 = vunpack.c.h.b16 %v275
        %v364 = vunpack.c.l.b16 %v276
        %v365 = vunpack.c.h.b16 %v276
        %v366 = vunpack.c.l.b16 %v277
        %v367 = vunpack.c.h.b16 %v277
        %v368 = vunpack.c.l.b16 %v278
        %v369 = vunpack.c.h.b16 %v278
        %v370 = vunpack.c.l.b16 %v279
        %v371 = vunpack.c.h.b16 %v279
        %v372 = vunpack.c.l.b16 %v280
        %v373 = vunpack.c.h.b16 %v280
        %v374 = vunpack.c.l.b16 %v281
        %v375 = vunpack.c.h.b16 %v281
        %v376 = vunpack.c.l.b16 %v282
        %v377 = vunpack.c.h.b16 %v282
        %v378 = vunpack.c.l.b16 %v283
        %v379 = vunpack.c.h.b16 %v283
        %v380 = vunpack.c.l.b16 %v284
        %v381 = vunpack.c.h.b16 %v284
        %v382 = vunpack.c.l.b16 %v285
        %v383 = vunpack.c.h.b16 %v285
        %v384 = vunpack.c.l.b16 %v286
        %v385 = vunpack.c.h.b16 %v286
        %v386 = vunpack.c.l.b16 %v287
        %v387 = vunpack.c.h.b16 %v287
        %v388 = vunpack.c.l.b16 %v288
        %v389 = vunpack.c.h.b16 %v288
        %v390 = vunpack.c.l.b16 %v289
        %v391 = vunpack.c.h.b16 %v289
        %v392 = vunpack.c.l.b16 %v290
        %v393 = vunpack.c.h.b16 %v290
        %v394 = vunpack.c.l.b16 %v291
        %v395 = vunpack.c.h.b16 %v291
        %v396 = vunpack.c.l.b16 %v292
        %v397 = vunpack.c.h.b16 %v292
        %v398 = vunpack.c.l.b16 %v293
        %v399 = vunpack.c.h.b16 %v293
        %v400 = vunpack.c.l.b16 %v294
        %v401 = vunpack.c.h.b16 %v294
        %v402 = vunpack.c.l.b16 %v295
        %v403 = vunpack.c.h.b16 %v295
        %v404 = vunpack.c.l.b16 %v296
        %v405 = vunpack.c.h.b16 %v296
        %v406 = vunpack.c.l.b16 %v297
        %v407 = vunpack.c.h.b16 %v297
        %v408 = vunpack.c.l.b16 %v298
        %v409 = vunpack.c.h.b16 %v298
        %v410 = vunpack.c.l.b16 %v299
        %v411 = vunpack.c.h.b16 %v299
        %v412 = vpack.c.b16 %v352, %v348
        %v413 = vpack.c.b16 %v353, %v349
        %v414 = vpack.c.b16 %v354, %v350
        %v415 = vpack.c.b16 %v355, %v351
        %v416 = vpack.c.b16 %v360, %v356
        %v417 = vpack.c.b16 %v361, %v357
        %v418 = vpack.c.b16 %v362, %v358
        %v419 = vpack.c.b16 %v363, %v359
        %v420 = vpack.c.b16 %v368, %v364
        %v421 = vpack.c.b16 %v369, %v365
        %v422 = vpack.c.b16 %v370, %v366
        %v423 = vpack.c.b16 %v371, %v367
        %v424 = vpack.c.b16 %v376, %v372
        %v425 = vpack.c.b16 %v377, %v373
        %v426 = vpack.c.b16 %v378, %v374
        %v427 = vpack.c.b16 %v379, %v375
        %v428 = vpack.c.b16 %v384, %v380
        %v429 = vpack.c.b16 %v385, %v381
        %v430 = vpack.c.b16 %v386, %v382
        %v431 = vpack.c.b16 %v387, %v383
        %v432 = vpack.c.b16 %v392, %v388
        %v433 = vpack.c.b16 %v393, %v389
        %v434 = vpack.c.b16 %v394, %v390
        %v435 = vpack.c.b16 %v395, %v391
        %v436 = vpack.c.b16 %v400, %v396
        %v437 = vpack.c.b16 %v401, %v397
        %v438 = vpack.c.b16 %v402, %v398
        %v439 = vpack.c.b16 %v403, %v399
        %v440 = vpack.c.b16 %v408, %v404
        %v441 = vpack.c.b16 %v409, %v405
        %v442 = vpack.c.b16 %v410, %v406
        %v443 = vpack.c.b16 %v411, %v407
        %476 = vmatpush.bf16.msra.mxu0 %v440
        %477 = vmatpush.bf16.msra.mxu0 %v436
        %478 = vmatpush.bf16.msra.mxu0 %v432
        %479 = vmatpush.bf16.msra.mxu0 %v428
        %480 = vmatpush.bf16.msra.mxu0 %v424
        %481 = vmatpush.bf16.msra.mxu0 %v420
        %482 = vmatpush.bf16.msra.mxu0 %v416
        %483 = vmatpush.bf16.msra.mxu0 %v412
        %484 = vmatmul.bf16.gmra.mxu0 %v314
        %v485 = vpop.f32.mrf.mxu0
        %v486 = vadd.f32 %v302, %v485
        %v487 = vpop.f32.mrf.mxu0
        %v488 = vadd.f32 %v302, %v487
        %489 = vdwg.mxu0
        %490 = vmatpush.bf16.msra.mxu0 %v441
        %491 = vmatpush.bf16.msra.mxu0 %v437
        %492 = vmatpush.bf16.msra.mxu0 %v433
        %493 = vmatpush.bf16.msra.mxu0 %v429
        %494 = vmatpush.bf16.msra.mxu0 %v425
        %495 = vmatpush.bf16.msra.mxu0 %v421
        %496 = vmatpush.bf16.msra.mxu0 %v417
        %497 = vmatpush.bf16.msra.mxu0 %v413
        %498 = vmatmul.bf16.gmra.mxu0 %v314
        %v499 = vpop.f32.mrf.mxu0
        %v500 = vadd.f32 %v303, %v499
        %v501 = vpop.f32.mrf.mxu0
        %v502 = vadd.f32 %v303, %v501
        %503 = vdwg.mxu0
        %504 = vmatpush.bf16.msra.mxu0 %v442
        %505 = vmatpush.bf16.msra.mxu0 %v438
        %506 = vmatpush.bf16.msra.mxu0 %v434
        %507 = vmatpush.bf16.msra.mxu0 %v430
        %508 = vmatpush.bf16.msra.mxu0 %v426
        %509 = vmatpush.bf16.msra.mxu0 %v422
        %510 = vmatpush.bf16.msra.mxu0 %v418
        %511 = vmatpush.bf16.msra.mxu0 %v414
        %512 = vmatmul.bf16.gmra.mxu0 %v314
        %v513 = vpop.f32.mrf.mxu0
        %v514 = vadd.f32 %v304, %v513
        %v515 = vpop.f32.mrf.mxu0
        %v516 = vadd.f32 %v304, %v515
        %517 = vdwg.mxu0
        %518 = vmatpush.bf16.msra.mxu0 %v443
        %519 = vmatpush.bf16.msra.mxu0 %v439
        %520 = vmatpush.bf16.msra.mxu0 %v435
        %521 = vmatpush.bf16.msra.mxu0 %v431
        %522 = vmatpush.bf16.msra.mxu0 %v427
        %523 = vmatpush.bf16.msra.mxu0 %v423
        %524 = vmatpush.bf16.msra.mxu0 %v419
        %525 = vmatpush.bf16.msra.mxu0 %v415
        %526 = vmatmul.bf16.gmra.mxu0 %v314
        %v527 = vpop.f32.mrf.mxu0
        %v528 = vadd.f32 %v305, %v527
        %v529 = vpop.f32.mrf.mxu0
        %v530 = vadd.f32 %v305, %v529
        %531 = vdwg.mxu0
        %v532 = vmax.f32 %v486, 0.0
        %v533 = vmax.f32 %v500, 0.0
        %v534 = vmax.f32 %v514, 0.0
        %v535 = vmax.f32 %v528, 0.0
        %v536 = vmax.f32 %v488, 0.0
        %v537 = vmax.f32 %v502, 0.0
        %v538 = vmax.f32 %v516, 0.0
        %v539 = vmax.f32 %v530, 0.0
        %v540 = vpack.c.bf16 %v533, %v532
        %v541 = vpack.c.bf16 %v535, %v534
        %v542 = vpack.c.bf16 %v537, %v536
        %v543 = vpack.c.bf16 %v539, %v538
        %544 = vst [vmem:[%s255] sm:$0xff] %v540
        %545 = vst [vmem:[%s255 + $0x8] sm:$0xff] %v541
        %546 = vst [vmem:[%s255 + $0x10] sm:$0xff] %v542
        %547 = vst [vmem:[%s255 + $0x18] sm:$0xff] %v543
        %s548 = sand.u32 %s120, 1
        %s549 = sand.u32 %s120, 1
        %s550 = smul.addr %s549, 32
        %s551 = scalar_lea.vmem [#allocation6], %s550
        // Predicated region
        $region41: #{generator_32_forward.4} parent=31 // pred_check
          %p552 = pneg %p130
        $region42: #{generator_32_forward.4} parent=31 // pred_check_branch
          %554 = sbr.rel (%p552) target = $region44
        $region43: #{generator_32_forward.4} parent=31 // pred_region
          %s555 = smul.u32 2, %s24
          %s556 = smul.u32 4, %s25
          %s557 = smul.addr %s555, 8
          %s558 = sadd.s32 %s556, %s557
          %s559 = smul.addr %s558, 4
          %s560 = scalar_lea.vmem %s3, %s559
          // Predicated region
          $region45: #{generator_32_forward.4} parent=43 // pred_check
            _
          $region46: #{generator_32_forward.4} parent=43 // pred_check_branch
            %562 = sbr.rel (0) target = $region48
          $region47: #{generator_32_forward.4} parent=43 // pred_region
            // Predicated region
            $region49: #{generator_32_forward.4} parent=47 // pred_check
              _
            $region50: #{generator_32_forward.4} parent=47 // pred_check_branch
              %564 = sbr.rel (0) target = $region52
            $region51: #{generator_32_forward.4} parent=47 // pred_region
              loop: start=0, step=1, limit=1
              $region53: #{generator_32_forward.4} parent=51 // loop_pre_header
                _
              $region54: #{generator_32_forward.4} parent=51 // loop_header
                %s566 = sphi 0, %s570
                %p567 = scmp.ge.s32.totalorder %s566, 1
                %s571 = sphi %s551, %s551
                %s572 = sphi %s560, %s560
              $region55: #{generator_32_forward.4} parent=51 // loop_header_branch
                %569 = sbr.rel (%p567) target = $region59
              $region56: #{generator_32_forward.4} parent=51 // loop_body
                %v573 = vld [vmem:[%s571] sm:$0xff]
                %574 = vst [vmem:[%s572] sm:$0xff] %v573
                %v575 = vld [vmem:[%s571 + $0x8] sm:$0xff]
                %576 = vst [vmem:[%s572 + $0x8] sm:$0xff] %v575
                %v577 = vld [vmem:[%s571 + $0x10] sm:$0xff]
                %578 = vst [vmem:[%s572 + $0x20] sm:$0xff] %v577
                %v579 = vld [vmem:[%s571 + $0x18] sm:$0xff]
                %580 = vst [vmem:[%s572 + $0x28] sm:$0xff] %v579
              $region57: #{generator_32_forward.4} parent=51 // loop_footer
                %s570 = sadd.s32 1, %s566
              $region58: #{generator_32_forward.4} parent=51 // loop_footer_branch
                %565 = sbr.rel target = $region54
              $region59: #{generator_32_forward.4} parent=51 // loop_exit
                _
            $region52: #{generator_32_forward.4} parent=47 // pred_fallthru
              _
            // Predicated region
            $region60: #{generator_32_forward.4} parent=47 // pred_check
              _
            $region61: #{generator_32_forward.4} parent=47 // pred_check_branch
              %582 = sbr.rel target = $region63
            $region62: #{generator_32_forward.4} parent=47 // pred_region
              _
            $region63: #{generator_32_forward.4} parent=47 // pred_fallthru
              _
          $region48: #{generator_32_forward.4} parent=43 // pred_fallthru
            _
          %583 = vnop
        $region44: #{generator_32_forward.4} parent=31 // pred_fallthru
          _
      $region32: #{generator_32_forward.4} parent=5 // pred_fallthru
        _
      %p584 = scmp.le.s32.totalorder 2, %s15
      // Predicated region
      $region64: #{generator_32_forward.4} parent=5 // pred_check
        %p585 = pneg %p584
      $region65: #{generator_32_forward.4} parent=5 // pred_check_branch
        %587 = sbr.rel (%p585) target = $region67
      $region66: #{generator_32_forward.4} parent=5 // pred_region
        %s588 = ssub.s32 %s15, 2
        // Predicated region
        $region68: #{generator_32_forward.4} parent=66 // pred_check
          %p589 = pneg %p136
        $region69: #{generator_32_forward.4} parent=66 // pred_check_branch
          %591 = sbr.rel (%p589) target = $region71
        $region70: #{generator_32_forward.4} parent=66 // pred_region
          %s592 = sand.u32 %s121, 1
          %s593 = sand.u32 %s121, 1
          %s594 = smul.addr %s593, 32
          %s595 = scalar_lea.vmem [#allocation6], %s594
        $region71: #{generator_32_forward.4} parent=66 // pred_fallthru
          _
      $region67: #{generator_32_forward.4} parent=5 // pred_fallthru
        _
    $region6: #{generator_32_forward.4} parent=1 // loop_footer
      %s19 = sadd.s32 1, %s15
    $region7: #{generator_32_forward.4} parent=1 // loop_footer_branch
      %14 = sbr.rel target = $region3
    $region8: #{generator_32_forward.4} parent=1 // loop_exit
      _
    %596 = vsyncpa [#allocation3], 1
    %s597 = scalar_lea.sflag [#allocation3], 1
    %598 = vsyncpa %s597, 1
    %599 = vsyncpa [#allocation5], 1
    %s600 = scalar_lea.sflag [#allocation5], 1
    %601 = vsyncpa %s600, 1

// kernel: generator_32_forward.5
$region0: #{generator_32_forward.5}
  #allocation0 [shape = 'u32[]', space=smem, size = 0x4, offset = 0x4, fixed_abs, tag = 'smem constant byte address 0x4 - core index']
  #allocation1 [shape = 'u32[72,128]{1,0:T(1,128)}', space=vmem, size = 0x9000, scoped, tag = 'internal scratch']
  %s0 = inlined_call_operand.vmem [shape: bf16[64,256], index: 0, kind: input, shape index: {}]
  %s1 = inlined_call_operand.vmem [shape: bf16[256,128], index: 1, kind: input, shape index: {}]
  %s2 = inlined_call_operand.vmem [shape: f32[1,128], index: 2, kind: input, shape index: {}]
  %s3 = inlined_call_operand.vmem [shape: bf16[64,128], index: 3, kind: output, shape index: {}]
  %s4 = sld [smem:[#allocation0]]
  $region22: #{generator_32_forward.5} parent=0
    _
  %s6 = ssub.s32 1, %s4
  %s7 = scalar_select 0, %s6, %s4
  // Predicated region
  $region2: #{generator_32_forward.5} parent=0 // pred_check
    _
  $region3: #{generator_32_forward.5} parent=0 // pred_check_branch
    %9 = sbr.rel (0) target = $region5
  $region4: #{generator_32_forward.5} parent=0 // pred_region
    _
  $region5: #{generator_32_forward.5} parent=0 // pred_fallthru
    _
  // Predicated region
  $region6: #{generator_32_forward.5} parent=0 // pred_check
    _
  $region7: #{generator_32_forward.5} parent=0 // pred_check_branch
    %11 = sbr.rel (0) target = $region9
  $region8: #{generator_32_forward.5} parent=0 // pred_region
    _
  $region9: #{generator_32_forward.5} parent=0 // pred_fallthru
    _
  // Predicated region
  $region10: #{generator_32_forward.5} parent=0 // pred_check
    _
  $region11: #{generator_32_forward.5} parent=0 // pred_check_branch
    %13 = sbr.rel (0) target = $region13
  $region12: #{generator_32_forward.5} parent=0 // pred_region
    _
  $region13: #{generator_32_forward.5} parent=0 // pred_fallthru
    _
  %v14 = vld [vmem:[%s0] sm:$0xff]
  %v15 = vld [vmem:[%s0 + $0x8] sm:$0xff]
  %v16 = vld [vmem:[%s0 + $0x10] sm:$0xff]
  %v17 = vld [vmem:[%s0 + $0x18] sm:$0xff]
  %v18 = vld [vmem:[%s0 + $0x20] sm:$0xff]
  %v19 = vld [vmem:[%s0 + $0x28] sm:$0xff]
  %v20 = vld [vmem:[%s0 + $0x30] sm:$0xff]
  %v21 = vld [vmem:[%s0 + $0x38] sm:$0xff]
  %v22 = vld [vmem:[%s1] sm:$0xf]
  %v23 = vld [vmem:[%s1 + $0x4] sm:$0xf]
  %v24 = vld [vmem:[%s1 + $0x8] sm:$0xf]
  %v25 = vld [vmem:[%s1 + $0xc] sm:$0xf]
  %v26 = vld [vmem:[%s1 + $0x10] sm:$0xf]
  %v27 = vld [vmem:[%s1 + $0x14] sm:$0xf]
  %v28 = vld [vmem:[%s1 + $0x18] sm:$0xf]
  %v29 = vld [vmem:[%s1 + $0x1c] sm:$0xf]
  %v30 = vld [vmem:[%s1 + $0x20] sm:$0xf]
  %v31 = vld [vmem:[%s1 + $0x24] sm:$0xf]
  %v32 = vld [vmem:[%s1 + $0x28] sm:$0xf]
  %v33 = vld [vmem:[%s1 + $0x2c] sm:$0xf]
  %v34 = vld [vmem:[%s1 + $0x30] sm:$0xf]
  %v35 = vld [vmem:[%s1 + $0x34] sm:$0xf]
  %v36 = vld [vmem:[%s1 + $0x38] sm:$0xf]
  %v37 = vld [vmem:[%s1 + $0x3c] sm:$0xf]
  %v38 = vld [vmem:[%s1 + $0x40] sm:$0xf]
  %v39 = vld [vmem:[%s1 + $0x44] sm:$0xf]
  %v40 = vld [vmem:[%s1 + $0x48] sm:$0xf]
  %v41 = vld [vmem:[%s1 + $0x4c] sm:$0xf]
  %v42 = vld [vmem:[%s1 + $0x50] sm:$0xf]
  %v43 = vld [vmem:[%s1 + $0x54] sm:$0xf]
  %v44 = vld [vmem:[%s1 + $0x58] sm:$0xf]
  %v45 = vld [vmem:[%s1 + $0x5c] sm:$0xf]
  %v46 = vld [vmem:[%s1 + $0x60] sm:$0xf]
  %v47 = vld [vmem:[%s1 + $0x64] sm:$0xf]
  %v48 = vld [vmem:[%s1 + $0x68] sm:$0xf]
  %v49 = vld [vmem:[%s1 + $0x6c] sm:$0xf]
  %v50 = vld [vmem:[%s1 + $0x70] sm:$0xf]
  %v51 = vld [vmem:[%s1 + $0x74] sm:$0xf]
  %v52 = vld [vmem:[%s1 + $0x78] sm:$0xf]
  %v53 = vld [vmem:[%s1 + $0x7c] sm:$0xf]
  %v54 = vld [vmem:[%s2] sm:$0x1]
  %v56 = vperm.slane %v54, 0
  %v66 = vunpack.c.l.b16 %v14
  %v67 = vunpack.c.h.b16 %v14
  %v68 = vunpack.c.l.b16 %v15
  %v69 = vunpack.c.h.b16 %v15
  %v70 = vunpack.c.l.b16 %v16
  %v71 = vunpack.c.h.b16 %v16
  %v72 = vunpack.c.l.b16 %v17
  %v73 = vunpack.c.h.b16 %v17
  %v74 = vunpack.c.l.b16 %v18
  %v75 = vunpack.c.h.b16 %v18
  %v76 = vunpack.c.l.b16 %v19
  %v77 = vunpack.c.h.b16 %v19
  %v78 = vunpack.c.l.b16 %v20
  %v79 = vunpack.c.h.b16 %v20
  %v80 = vunpack.c.l.b16 %v21
  %v81 = vunpack.c.h.b16 %v21
  %v82 = vpack.c.b16 %v68, %v66
  %v83 = vpack.c.b16 %v69, %v67
  %v84 = vpack.c.b16 %v72, %v70
  %v85 = vpack.c.b16 %v73, %v71
  %v86 = vpack.c.b16 %v76, %v74
  %v87 = vpack.c.b16 %v77, %v75
  %v88 = vpack.c.b16 %v80, %v78
  %v89 = vpack.c.b16 %v81, %v79
  %v130 = vunpack.c.l.b16 %v22
  %v131 = vunpack.c.l.b16 %v23
  %v132 = vunpack.c.l.b16 %v24
  %v133 = vunpack.c.l.b16 %v25
  %v134 = vunpack.c.l.b16 %v26
  %v135 = vunpack.c.l.b16 %v27
  %v136 = vunpack.c.l.b16 %v28
  %v137 = vunpack.c.l.b16 %v29
  %v138 = vunpack.c.l.b16 %v30
  %v139 = vunpack.c.l.b16 %v31
  %v140 = vunpack.c.l.b16 %v32
  %v141 = vunpack.c.l.b16 %v33
  %v142 = vunpack.c.l.b16 %v34
  %v143 = vunpack.c.l.b16 %v35
  %v144 = vunpack.c.l.b16 %v36
  %v145 = vunpack.c.l.b16 %v37
  %v146 = vunpack.c.l.b16 %v38
  %v147 = vunpack.c.l.b16 %v39
  %v148 = vunpack.c.l.b16 %v40
  %v149 = vunpack.c.l.b16 %v41
  %v150 = vunpack.c.l.b16 %v42
  %v151 = vunpack.c.l.b16 %v43
  %v152 = vunpack.c.l.b16 %v44
  %v153 = vunpack.c.l.b16 %v45
  %v154 = vunpack.c.l.b16 %v46
  %v155 = vunpack.c.l.b16 %v47
  %v156 = vunpack.c.l.b16 %v48
  %v157 = vunpack.c.l.b16 %v49
  %v158 = vunpack.c.l.b16 %v50
  %v159 = vunpack.c.l.b16 %v51
  %v160 = vunpack.c.l.b16 %v52
  %v161 = vunpack.c.l.b16 %v53
  %v162 = vpack.c.b16 %v131, %v130
  %v163 = vpack.c.b16 %v133, %v132
  %v164 = vpack.c.b16 %v135, %v134
  %v165 = vpack.c.b16 %v137, %v136
  %v166 = vpack.c.b16 %v139, %v138
  %v167 = vpack.c.b16 %v141, %v140
  %v168 = vpack.c.b16 %v143, %v142
  %v169 = vpack.c.b16 %v145, %v144
  %v170 = vpack.c.b16 %v147, %v146
  %v171 = vpack.c.b16 %v149, %v148
  %v172 = vpack.c.b16 %v151, %v150
  %v173 = vpack.c.b16 %v153, %v152
  %v174 = vpack.c.b16 %v155, %v154
  %v175 = vpack.c.b16 %v157, %v156
  %v176 = vpack.c.b16 %v159, %v158
  %v177 = vpack.c.b16 %v161, %v160
  %194 = vmatpush.bf16.msra.mxu0 %v169
  %195 = vmatpush.bf16.msra.mxu0 %v168
  %196 = vmatpush.bf16.msra.mxu0 %v167
  %197 = vmatpush.bf16.msra.mxu0 %v166
  %198 = vmatpush.bf16.msra.mxu0 %v165
  %199 = vmatpush.bf16.msra.mxu0 %v164
  %200 = vmatpush.bf16.msra.mxu0 %v163
  %201 = vmatpush.bf16.msra.mxu0 %v162
  %202 = vmatmul.bf16.gmra.mxu0 %v82
  %v203 = vpop.f32.mrf.mxu0
  %v204 = vadd.f32 %v56, %v203
  %v205 = vpop.f32.mrf.mxu0
  %v206 = vadd.f32 %v56, %v205
  %207 = vmatmul.bf16.gmra.mxu0 %v84
  %v208 = vpop.f32.mrf.mxu0
  %v209 = vadd.f32 %v56, %v208
  %v210 = vpop.f32.mrf.mxu0
  %v211 = vadd.f32 %v56, %v210
  %212 = vmatmul.bf16.gmra.mxu0 %v86
  %v213 = vpop.f32.mrf.mxu0
  %v214 = vadd.f32 %v56, %v213
  %v215 = vpop.f32.mrf.mxu0
  %v216 = vadd.f32 %v56, %v215
  %217 = vmatmul.bf16.gmra.mxu0 %v88
  %v218 = vpop.f32.mrf.mxu0
  %v219 = vadd.f32 %v56, %v218
  %v220 = vpop.f32.mrf.mxu0
  %v221 = vadd.f32 %v56, %v220
  %222 = vdwg.mxu0
  %223 = vmatpush.bf16.msra.mxu0 %v177
  %224 = vmatpush.bf16.msra.mxu0 %v176
  %225 = vmatpush.bf16.msra.mxu0 %v175
  %226 = vmatpush.bf16.msra.mxu0 %v174
  %227 = vmatpush.bf16.msra.mxu0 %v173
  %228 = vmatpush.bf16.msra.mxu0 %v172
  %229 = vmatpush.bf16.msra.mxu0 %v171
  %230 = vmatpush.bf16.msra.mxu0 %v170
  %231 = vmatmul.bf16.gmra.mxu0 %v83
  %v232 = vpop.f32.mrf.mxu0
  %v233 = vadd.f32 %v204, %v232
  %v234 = vpop.f32.mrf.mxu0
  %v235 = vadd.f32 %v206, %v234
  %236 = vmatmul.bf16.gmra.mxu0 %v85
  %v237 = vpop.f32.mrf.mxu0
  %v238 = vadd.f32 %v209, %v237
  %v239 = vpop.f32.mrf.mxu0
  %v240 = vadd.f32 %v211, %v239
  %241 = vmatmul.bf16.gmra.mxu0 %v87
  %v242 = vpop.f32.mrf.mxu0
  %v243 = vadd.f32 %v214, %v242
  %v244 = vpop.f32.mrf.mxu0
  %v245 = vadd.f32 %v216, %v244
  %246 = vmatmul.bf16.gmra.mxu0 %v89
  %v247 = vpop.f32.mrf.mxu0
  %v248 = vadd.f32 %v219, %v247
  %v249 = vpop.f32.mrf.mxu0
  %v250 = vadd.f32 %v221, %v249
  %251 = vdwg.mxu0
  %v252 = vmax.f32 %v233, 0.0
  %v253 = vmax.f32 %v235, 0.0
  %v254 = vmax.f32 %v238, 0.0
  %v255 = vmax.f32 %v240, 0.0
  %v256 = vmax.f32 %v243, 0.0
  %v257 = vmax.f32 %v245, 0.0
  %v258 = vmax.f32 %v248, 0.0
  %v259 = vmax.f32 %v250, 0.0
  %v260 = vpack.c.bf16 %v252, %v252
  %v261 = vpack.c.bf16 %v253, %v253
  %v262 = vpack.c.bf16 %v254, %v254
  %v263 = vpack.c.bf16 %v255, %v255
  %v264 = vpack.c.bf16 %v256, %v256
  %v265 = vpack.c.bf16 %v257, %v257
  %v266 = vpack.c.bf16 %v258, %v258
  %v267 = vpack.c.bf16 %v259, %v259
  %268 = vst [vmem:[%s3] sm:$0xf] %v260
  %269 = vst [vmem:[%s3 + $0x4] sm:$0xf] %v261
  %270 = vst [vmem:[%s3 + $0x8] sm:$0xf] %v262
  %271 = vst [vmem:[%s3 + $0xc] sm:$0xf] %v263
  %272 = vst [vmem:[%s3 + $0x10] sm:$0xf] %v264
  %273 = vst [vmem:[%s3 + $0x14] sm:$0xf] %v265
  %274 = vst [vmem:[%s3 + $0x18] sm:$0xf] %v266
  %275 = vst [vmem:[%s3 + $0x1c] sm:$0xf] %v267
  // Predicated region
  $region14: #{generator_32_forward.5} parent=0 // pred_check
    _
  $region15: #{generator_32_forward.5} parent=0 // pred_check_branch
    %277 = sbr.rel (0) target = $region17
  $region16: #{generator_32_forward.5} parent=0 // pred_region
    _
  $region17: #{generator_32_forward.5} parent=0 // pred_fallthru
    _
  // Predicated region
  $region18: #{generator_32_forward.5} parent=0 // pred_check
    _
  $region19: #{generator_32_forward.5} parent=0 // pred_check_branch
    %279 = sbr.rel (0) target = $region21
  $region20: #{generator_32_forward.5} parent=0 // pred_region
    _
  $region21: #{generator_32_forward.5} parent=0 // pred_fallthru
    _

// kernel: generator_32_forward.6
$region0: #{generator_32_forward.6}
  #allocation0 [shape = 'u32[]', space=smem, size = 0x4, offset = 0x4, fixed_abs, tag = 'smem constant byte address 0x4 - core index']
  #allocation1 [shape = 'u32[72,128]{1,0:T(1,128)}', space=vmem, size = 0x9000, scoped, tag = 'internal scratch']
  %s0 = inlined_call_operand.vmem [shape: bf16[176,128], index: 0, kind: input, shape index: {}]
  %s1 = inlined_call_operand.vmem [shape: bf16[128,128], index: 1, kind: input, shape index: {}]
  %s2 = inlined_call_operand.vmem [shape: f32[1,128], index: 2, kind: input, shape index: {}]
  %s3 = inlined_call_operand.vmem [shape: bf16[176,128], index: 3, kind: output, shape index: {}]
  %s4 = sld [smem:[#allocation0]]
  $region22: #{generator_32_forward.6} parent=0
    _
  %s6 = ssub.s32 1, %s4
  %s7 = scalar_select 0, %s6, %s4
  // Predicated region
  $region2: #{generator_32_forward.6} parent=0 // pred_check
    _
  $region3: #{generator_32_forward.6} parent=0 // pred_check_branch
    %9 = sbr.rel (0) target = $region5
  $region4: #{generator_32_forward.6} parent=0 // pred_region
    _
  $region5: #{generator_32_forward.6} parent=0 // pred_fallthru
    _
  // Predicated region
  $region6: #{generator_32_forward.6} parent=0 // pred_check
    _
  $region7: #{generator_32_forward.6} parent=0 // pred_check_branch
    %11 = sbr.rel (0) target = $region9
  $region8: #{generator_32_forward.6} parent=0 // pred_region
    _
  $region9: #{generator_32_forward.6} parent=0 // pred_fallthru
    _
  // Predicated region
  $region10: #{generator_32_forward.6} parent=0 // pred_check
    _
  $region11: #{generator_32_forward.6} parent=0 // pred_check_branch
    %13 = sbr.rel (0) target = $region13
  $region12: #{generator_32_forward.6} parent=0 // pred_region
    _
  $region13: #{generator_32_forward.6} parent=0 // pred_fallthru
    _
  %v14 = vld [vmem:[%s0] sm:$0xf]
  %v15 = vld [vmem:[%s0 + $0x4] sm:$0xf]
  %v16 = vld [vmem:[%s0 + $0x8] sm:$0xf]
  %v17 = vld [vmem:[%s0 + $0xc] sm:$0xf]
  %v18 = vld [vmem:[%s0 + $0x10] sm:$0xf]
  %v19 = vld [vmem:[%s0 + $0x14] sm:$0xf]
  %v20 = vld [vmem:[%s0 + $0x18] sm:$0xf]
  %v21 = vld [vmem:[%s0 + $0x1c] sm:$0xf]
  %v22 = vld [vmem:[%s0 + $0x20] sm:$0xf]
  %v23 = vld [vmem:[%s0 + $0x24] sm:$0xf]
  %v24 = vld [vmem:[%s0 + $0x28] sm:$0xf]
  %v25 = vld [vmem:[%s0 + $0x2c] sm:$0xf]
  %v26 = vld [vmem:[%s0 + $0x30] sm:$0xf]
  %v27 = vld [vmem:[%s0 + $0x34] sm:$0xf]
  %v28 = vld [vmem:[%s0 + $0x38] sm:$0xf]
  %v29 = vld [vmem:[%s0 + $0x3c] sm:$0xf]
  %v30 = vld [vmem:[%s0 + $0x40] sm:$0xf]
  %v31 = vld [vmem:[%s0 + $0x44] sm:$0xf]
  %v32 = vld [vmem:[%s0 + $0x48] sm:$0xf]
  %v33 = vld [vmem:[%s0 + $0x4c] sm:$0xf]
  %v34 = vld [vmem:[%s0 + $0x50] sm:$0xf]
  %v35 = vld [vmem:[%s0 + $0x54] sm:$0xf]
  %v36 = vld [vmem:[%s1] sm:$0xf]
  %v37 = vld [vmem:[%s1 + $0x4] sm:$0xf]
  %v38 = vld [vmem:[%s1 + $0x8] sm:$0xf]
  %v39 = vld [vmem:[%s1 + $0xc] sm:$0xf]
  %v40 = vld [vmem:[%s1 + $0x10] sm:$0xf]
  %v41 = vld [vmem:[%s1 + $0x14] sm:$0xf]
  %v42 = vld [vmem:[%s1 + $0x18] sm:$0xf]
  %v43 = vld [vmem:[%s1 + $0x1c] sm:$0xf]
  %v44 = vld [vmem:[%s1 + $0x20] sm:$0xf]
  %v45 = vld [vmem:[%s1 + $0x24] sm:$0xf]
  %v46 = vld [vmem:[%s1 + $0x28] sm:$0xf]
  %v47 = vld [vmem:[%s1 + $0x2c] sm:$0xf]
  %v48 = vld [vmem:[%s1 + $0x30] sm:$0xf]
  %v49 = vld [vmem:[%s1 + $0x34] sm:$0xf]
  %v50 = vld [vmem:[%s1 + $0x38] sm:$0xf]
  %v51 = vld [vmem:[%s1 + $0x3c] sm:$0xf]
  %v52 = vld [vmem:[%s2] sm:$0x1]
  %v54 = vperm.slane %v52, 0
  %v78 = vunpack.c.l.b16 %v14
  %v79 = vunpack.c.l.b16 %v15
  %v80 = vunpack.c.l.b16 %v16
  %v81 = vunpack.c.l.b16 %v17
  %v82 = vunpack.c.l.b16 %v18
  %v83 = vunpack.c.l.b16 %v19
  %v84 = vunpack.c.l.b16 %v20
  %v85 = vunpack.c.l.b16 %v21
  %v86 = vunpack.c.l.b16 %v22
  %v87 = vunpack.c.l.b16 %v23
  %v88 = vunpack.c.l.b16 %v24
  %v89 = vunpack.c.l.b16 %v25
  %v90 = vunpack.c.l.b16 %v26
  %v91 = vunpack.c.l.b16 %v27
  %v92 = vunpack.c.l.b16 %v28
  %v93 = vunpack.c.l.b16 %v29
  %v94 = vunpack.c.l.b16 %v30
  %v95 = vunpack.c.l.b16 %v31
  %v96 = vunpack.c.l.b16 %v32
  %v97 = vunpack.c.l.b16 %v33
  %v98 = vunpack.c.l.b16 %v34
  %v99 = vunpack.c.l.b16 %v35
  %v100 = vpack.c.b16 %v79, %v78
  %v101 = vpack.c.b16 %v81, %v80
  %v102 = vpack.c.b16 %v83, %v82
  %v103 = vpack.c.b16 %v85, %v84
  %v104 = vpack.c.b16 %v87, %v86
  %v105 = vpack.c.b16 %v89, %v88
  %v106 = vpack.c.b16 %v91, %v90
  %v107 = vpack.c.b16 %v93, %v92
  %v108 = vpack.c.b16 %v95, %v94
  %v109 = vpack.c.b16 %v97, %v96
  %v110 = vpack.c.b16 %v99, %v98
  %v138 = vunpack.c.l.b16 %v36
  %v139 = vunpack.c.l.b16 %v37
  %v140 = vunpack.c.l.b16 %v38
  %v141 = vunpack.c.l.b16 %v39
  %v142 = vunpack.c.l.b16 %v40
  %v143 = vunpack.c.l.b16 %v41
  %v144 = vunpack.c.l.b16 %v42
  %v145 = vunpack.c.l.b16 %v43
  %v146 = vunpack.c.l.b16 %v44
  %v147 = vunpack.c.l.b16 %v45
  %v148 = vunpack.c.l.b16 %v46
  %v149 = vunpack.c.l.b16 %v47
  %v150 = vunpack.c.l.b16 %v48
  %v151 = vunpack.c.l.b16 %v49
  %v152 = vunpack.c.l.b16 %v50
  %v153 = vunpack.c.l.b16 %v51
  %v154 = vpack.c.b16 %v139, %v138
  %v155 = vpack.c.b16 %v141, %v140
  %v156 = vpack.c.b16 %v143, %v142
  %v157 = vpack.c.b16 %v145, %v144
  %v158 = vpack.c.b16 %v147, %v146
  %v159 = vpack.c.b16 %v149, %v148
  %v160 = vpack.c.b16 %v151, %v150
  %v161 = vpack.c.b16 %v153, %v152
  %170 = vmatpush.bf16.msra.mxu0 %v161
  %171 = vmatpush.bf16.msra.mxu0 %v160
  %172 = vmatpush.bf16.msra.mxu0 %v159
  %173 = vmatpush.bf16.msra.mxu0 %v158
  %174 = vmatpush.bf16.msra.mxu0 %v157
  %175 = vmatpush.bf16.msra.mxu0 %v156
  %176 = vmatpush.bf16.msra.mxu0 %v155
  %177 = vmatpush.bf16.msra.mxu0 %v154
  %178 = vmatmul.bf16.gmra.mxu0 %v100
  %v179 = vpop.f32.mrf.mxu0
  %v180 = vadd.f32 %v54, %v179
  %v181 = vpop.f32.mrf.mxu0
  %v182 = vadd.f32 %v54, %v181
  %183 = vmatmul.bf16.gmra.mxu0 %v101
  %v184 = vpop.f32.mrf.mxu0
  %v185 = vadd.f32 %v54, %v184
  %v186 = vpop.f32.mrf.mxu0
  %v187 = vadd.f32 %v54, %v186
  %188 = vmatmul.bf16.gmra.mxu0 %v102
  %v189 = vpop.f32.mrf.mxu0
  %v190 = vadd.f32 %v54, %v189
  %v191 = vpop.f32.mrf.mxu0
  %v192 = vadd.f32 %v54, %v191
  %193 = vmatmul.bf16.gmra.mxu0 %v103
  %v194 = vpop.f32.mrf.mxu0
  %v195 = vadd.f32 %v54, %v194
  %v196 = vpop.f32.mrf.mxu0
  %v197 = vadd.f32 %v54, %v196
  %198 = vmatmul.bf16.gmra.mxu0 %v104
  %v199 = vpop.f32.mrf.mxu0
  %v200 = vadd.f32 %v54, %v199
  %v201 = vpop.f32.mrf.mxu0
  %v202 = vadd.f32 %v54, %v201
  %203 = vmatmul.bf16.gmra.mxu0 %v105
  %v204 = vpop.f32.mrf.mxu0
  %v205 = vadd.f32 %v54, %v204
  %v206 = vpop.f32.mrf.mxu0
  %v207 = vadd.f32 %v54, %v206
  %208 = vmatmul.bf16.gmra.mxu0 %v106
  %v209 = vpop.f32.mrf.mxu0
  %v210 = vadd.f32 %v54, %v209
  %v211 = vpop.f32.mrf.mxu0
  %v212 = vadd.f32 %v54, %v211
  %213 = vmatmul.bf16.gmra.mxu0 %v107
  %v214 = vpop.f32.mrf.mxu0
  %v215 = vadd.f32 %v54, %v214
  %v216 = vpop.f32.mrf.mxu0
  %v217 = vadd.f32 %v54, %v216
  %218 = vmatmul.bf16.gmra.mxu0 %v108
  %v219 = vpop.f32.mrf.mxu0
  %v220 = vadd.f32 %v54, %v219
  %v221 = vpop.f32.mrf.mxu0
  %v222 = vadd.f32 %v54, %v221
  %223 = vmatmul.bf16.gmra.mxu0 %v109
  %v224 = vpop.f32.mrf.mxu0
  %v225 = vadd.f32 %v54, %v224
  %v226 = vpop.f32.mrf.mxu0
  %v227 = vadd.f32 %v54, %v226
  %228 = vmatmul.bf16.gmra.mxu0 %v110
  %v229 = vpop.f32.mrf.mxu0
  %v230 = vadd.f32 %v54, %v229
  %v231 = vpop.f32.mrf.mxu0
  %v232 = vadd.f32 %v54, %v231
  %233 = vdwg.mxu0
  %v234 = vmax.f32 %v180, 0.0
  %v235 = vmax.f32 %v182, 0.0
  %v236 = vmax.f32 %v185, 0.0
  %v237 = vmax.f32 %v187, 0.0
  %v238 = vmax.f32 %v190, 0.0
  %v239 = vmax.f32 %v192, 0.0
  %v240 = vmax.f32 %v195, 0.0
  %v241 = vmax.f32 %v197, 0.0
  %v242 = vmax.f32 %v200, 0.0
  %v243 = vmax.f32 %v202, 0.0
  %v244 = vmax.f32 %v205, 0.0
  %v245 = vmax.f32 %v207, 0.0
  %v246 = vmax.f32 %v210, 0.0
  %v247 = vmax.f32 %v212, 0.0
  %v248 = vmax.f32 %v215, 0.0
  %v249 = vmax.f32 %v217, 0.0
  %v250 = vmax.f32 %v220, 0.0
  %v251 = vmax.f32 %v222, 0.0
  %v252 = vmax.f32 %v225, 0.0
  %v253 = vmax.f32 %v227, 0.0
  %v254 = vmax.f32 %v230, 0.0
  %v255 = vmax.f32 %v232, 0.0
  %v256 = vpack.c.bf16 %v234, %v234
  %v257 = vpack.c.bf16 %v235, %v235
  %v258 = vpack.c.bf16 %v236, %v236
  %v259 = vpack.c.bf16 %v237, %v237
  %v260 = vpack.c.bf16 %v238, %v238
  %v261 = vpack.c.bf16 %v239, %v239
  %v262 = vpack.c.bf16 %v240, %v240
  %v263 = vpack.c.bf16 %v241, %v241
  %v264 = vpack.c.bf16 %v242, %v242
  %v265 = vpack.c.bf16 %v243, %v243
  %v266 = vpack.c.bf16 %v244, %v244
  %v267 = vpack.c.bf16 %v245, %v245
  %v268 = vpack.c.bf16 %v246, %v246
  %v269 = vpack.c.bf16 %v247, %v247
  %v270 = vpack.c.bf16 %v248, %v248
  %v271 = vpack.c.bf16 %v249, %v249
  %v272 = vpack.c.bf16 %v250, %v250
  %v273 = vpack.c.bf16 %v251, %v251
  %v274 = vpack.c.bf16 %v252, %v252
  %v275 = vpack.c.bf16 %v253, %v253
  %v276 = vpack.c.bf16 %v254, %v254
  %v277 = vpack.c.bf16 %v255, %v255
  %278 = vst [vmem:[%s3] sm:$0xf] %v256
  %279 = vst [vmem:[%s3 + $0x4] sm:$0xf] %v257
  %280 = vst [vmem:[%s3 + $0x8] sm:$0xf] %v258
  %281 = vst [vmem:[%s3 + $0xc] sm:$0xf] %v259
  %282 = vst [vmem:[%s3 + $0x10] sm:$0xf] %v260
  %283 = vst [vmem:[%s3 + $0x14] sm:$0xf] %v261
  %284 = vst [vmem:[%s3 + $0x18] sm:$0xf] %v262
  %285 = vst [vmem:[%s3 + $0x1c] sm:$0xf] %v263
  %286 = vst [vmem:[%s3 + $0x20] sm:$0xf] %v264
  %287 = vst [vmem:[%s3 + $0x24] sm:$0xf] %v265
  %288 = vst [vmem:[%s3 + $0x28] sm:$0xf] %v266
  %289 = vst [vmem:[%s3 + $0x2c] sm:$0xf] %v267
  %290 = vst [vmem:[%s3 + $0x30] sm:$0xf] %v268
  %291 = vst [vmem:[%s3 + $0x34] sm:$0xf] %v269
  %292 = vst [vmem:[%s3 + $0x38] sm:$0xf] %v270
  %293 = vst [vmem:[%s3 + $0x3c] sm:$0xf] %v271
  %294 = vst [vmem:[%s3 + $0x40] sm:$0xf] %v272
  %295 = vst [vmem:[%s3 + $0x44] sm:$0xf] %v273
  %296 = vst [vmem:[%s3 + $0x48] sm:$0xf] %v274
  %297 = vst [vmem:[%s3 + $0x4c] sm:$0xf] %v275
  %298 = vst [vmem:[%s3 + $0x50] sm:$0xf] %v276
  %299 = vst [vmem:[%s3 + $0x54] sm:$0xf] %v277
  // Predicated region
  $region14: #{generator_32_forward.6} parent=0 // pred_check
    _
  $region15: #{generator_32_forward.6} parent=0 // pred_check_branch
    %301 = sbr.rel (0) target = $region17
  $region16: #{generator_32_forward.6} parent=0 // pred_region
    _
  $region17: #{generator_32_forward.6} parent=0 // pred_fallthru
    _
  // Predicated region
  $region18: #{generator_32_forward.6} parent=0 // pred_check
    _
  $region19: #{generator_32_forward.6} parent=0 // pred_check_branch
    %303 = sbr.rel (0) target = $region21
  $region20: #{generator_32_forward.6} parent=0 // pred_region
    _
  $region21: #{generator_32_forward.6} parent=0 // pred_fallthru
    _

// kernel: generator_32_forward.7
$region0: #{generator_32_forward.7}
  #allocation0 [shape = 'u32[]', space=smem, size = 0x4, offset = 0x4, fixed_abs, tag = 'smem constant byte address 0x4 - core index']
  #allocation1 [shape = 'u32[72,128]{1,0:T(1,128)}', space=vmem, size = 0x9000, scoped, tag = 'internal scratch']
  %s0 = inlined_call_operand.vmem [shape: bf16[16,128], index: 0, kind: input, shape index: {}]
  %s1 = inlined_call_operand.vmem [shape: bf16[768,128], index: 1, kind: input, shape index: {}]
  %s2 = inlined_call_operand.vmem [shape: f32[16,1], index: 2, kind: input, shape index: {}]
  %s3 = inlined_call_operand.vmem [shape: f32[16,768], index: 3, kind: output, shape index: {}]
  %s4 = sld [smem:[#allocation0]]
  $region64: #{generator_32_forward.7} parent=0
    _
  %s6 = ssub.s32 1, %s4
  %s7 = scalar_select 0, %s6, %s4
  $region1: #{generator_32_forward.7} parent=0
    #allocation2 [shape = 'u8[49152]{0}', space=vmem, size = 0xc000, scoped, tag = 'output window, operand 0']
    loop: start=0, step=1, limit=4
    $region2: #{generator_32_forward.7} parent=1 // loop_pre_header
      _
    $region3: #{generator_32_forward.7} parent=1 // loop_header
      %s9 = sphi 0, %s13
      %p10 = scmp.ge.s32.totalorder %s9, 4
      %s17 = sphi 0, %s17
      %s19 = sphi 0, %s17
      %s20 = sphi 0, %s19
      %s34 = sphi 0, %s20
      %s40 = sphi 0, %s42
      %s43 = sphi 0, %s40
      %s44 = sphi 0, %s43
      %s60 = sphi 0, %s44
      %s64 = sphi 0, %s64
      %s66 = sphi 0, %s64
      %s67 = sphi 0, %s66
      %s81 = sphi 0, %s67
      %s87 = sphi 0, %s89
      %s90 = sphi 0, %s87
      %s91 = sphi 0, %s90
      %s107 = sphi 0, %s91
    $region4: #{generator_32_forward.7} parent=1 // loop_header_branch
      %12 = sbr.rel (%p10) target = $region8
    $region5: #{generator_32_forward.7} parent=1 // loop_body
      %s14 = ssub.s32 %s9, 1
      %s15 = ssub.s32 %s9, 2
      %s16 = sadd.s32 %s9, 1
      %s18 = sadd.s32 %s17, 1
      %p21 = scmp.eq.s32.totalorder %s9, 1
      %p22 = scmp.ne.s32.totalorder %s17, %s19
      %p23 = scmp.eq.s32.totalorder %s9, 0
      %p24 = por %p22, %p23
      %p25 = scmp.ne.s32.totalorder %s17, %s19
      %p26 = scmp.eq.s32.totalorder %s14, 1
      %p27 = por %p25, %p26
      %p28 = scmp.ne.s32.totalorder %s19, %s20
      %p29 = scmp.eq.s32.totalorder %s14, 0
      %p30 = por %p28, %p29
      %p31 = scmp.ne.s32.totalorder %s19, %s20
      %p32 = scmp.eq.s32.totalorder %s15, 1
      %p33 = por %p31, %p32
      %p35 = scmp.ne.s32.totalorder %s20, %s34
      %p36 = scmp.eq.s32.totalorder %s15, 0
      %p37 = por %p35, %p36
      %s38 = ssub.s32 %s9, %s16
      %p39 = scmp.eq.s32.totalorder %s38, 0
      %s41 = sadd.s32 %s40, 1
      %s42 = scalar_select %p39, %s40, %s41
      %p45 = pneg %p39
      %p46 = scmp.eq.s32.totalorder %s9, 1
      %p47 = por %p45, %p46
      %p48 = scmp.ne.s32.totalorder %s40, %s43
      %p49 = scmp.eq.s32.totalorder %s9, 0
      %p50 = por %p48, %p49
      %p51 = scmp.ne.s32.totalorder %s40, %s43
      %p52 = scmp.eq.s32.totalorder %s14, 1
      %p53 = por %p51, %p52
      %p54 = scmp.ne.s32.totalorder %s43, %s44
      %p55 = scmp.eq.s32.totalorder %s14, 0
      %p56 = por %p54, %p55
      %p57 = scmp.ne.s32.totalorder %s43, %s44
      %p58 = scmp.eq.s32.totalorder %s15, 1
      %p59 = por %p57, %p58
      %p61 = scmp.ne.s32.totalorder %s44, %s60
      %p62 = scmp.eq.s32.totalorder %s15, 0
      %p63 = por %p61, %p62
      %s65 = sadd.s32 %s64, 1
      %p68 = scmp.eq.s32.totalorder %s9, 1
      %p69 = scmp.ne.s32.totalorder %s64, %s66
      %p70 = scmp.eq.s32.totalorder %s9, 0
      %p71 = por %p69, %p70
      %p72 = scmp.ne.s32.totalorder %s64, %s66
      %p73 = scmp.eq.s32.totalorder %s14, 1
      %p74 = por %p72, %p73
      %p75 = scmp.ne.s32.totalorder %s66, %s67
      %p76 = scmp.eq.s32.totalorder %s14, 0
      %p77 = por %p75, %p76
      %p78 = scmp.ne.s32.totalorder %s66, %s67
      %p79 = scmp.eq.s32.totalorder %s15, 1
      %p80 = por %p78, %p79
      %p82 = scmp.ne.s32.totalorder %s67, %s81
      %p83 = scmp.eq.s32.totalorder %s15, 0
      %p84 = por %p82, %p83
      %s85 = ssub.s32 %s9, %s16
      %p86 = scmp.eq.s32.totalorder %s85, 0
      %s88 = sadd.s32 %s87, 1
      %s89 = scalar_select %p86, %s87, %s88
      %p92 = pneg %p86
      %p93 = scmp.eq.s32.totalorder %s9, 1
      %p94 = por %p92, %p93
      %p95 = scmp.ne.s32.totalorder %s87, %s90
      %p96 = scmp.eq.s32.totalorder %s9, 0
      %p97 = por %p95, %p96
      %p98 = scmp.ne.s32.totalorder %s87, %s90
      %p99 = scmp.eq.s32.totalorder %s14, 1
      %p100 = por %p98, %p99
      %p101 = scmp.ne.s32.totalorder %s90, %s91
      %p102 = scmp.eq.s32.totalorder %s14, 0
      %p103 = por %p101, %p102
      %p104 = scmp.ne.s32.totalorder %s90, %s91
      %p105 = scmp.eq.s32.totalorder %s15, 1
      %p106 = por %p104, %p105
      %p108 = scmp.ne.s32.totalorder %s91, %s107
      %p109 = scmp.eq.s32.totalorder %s15, 0
      %p110 = por %p108, %p109
      %p111 = scmp.le.s32.totalorder 1, %s9
      %p112 = scmp.lt.s32.totalorder %s9, 3
      %p113 = pnand %p111, %p112
      %p114 = pneg %p113
      // Predicated region
      $region9: #{generator_32_forward.7} parent=5 // pred_check
        _
      $region10: #{generator_32_forward.7} parent=5 // pred_check_branch
        %116 = sbr.rel (%p113) target = $region12
      $region11: #{generator_32_forward.7} parent=5 // pred_region
        %s117 = ssub.s32 %s9, 1
        // Predicated region
        $region13: #{generator_32_forward.7} parent=11 // pred_check
          %p118 = pneg %p30
        $region14: #{generator_32_forward.7} parent=11 // pred_check_branch
          %120 = sbr.rel (%p118) target = $region16
        $region15: #{generator_32_forward.7} parent=11 // pred_region
          _
        $region16: #{generator_32_forward.7} parent=11 // pred_fallthru
          _
        // Predicated region
        $region17: #{generator_32_forward.7} parent=11 // pred_check
          %p121 = pneg %p77
        $region18: #{generator_32_forward.7} parent=11 // pred_check_branch
          %123 = sbr.rel (%p121) target = $region20
        $region19: #{generator_32_forward.7} parent=11 // pred_region
          _
        $region20: #{generator_32_forward.7} parent=11 // pred_fallthru
          _
      $region12: #{generator_32_forward.7} parent=5 // pred_fallthru
        _
      %p124 = scmp.lt.s32.totalorder %s9, 2
      // Predicated region
      $region21: #{generator_32_forward.7} parent=5 // pred_check
        %p125 = pneg %p124
      $region22: #{generator_32_forward.7} parent=5 // pred_check_branch
        %127 = sbr.rel (%p125) target = $region24
      $region23: #{generator_32_forward.7} parent=5 // pred_region
        // Predicated region
        $region25: #{generator_32_forward.7} parent=23 // pred_check
          %p128 = pneg %p50
        $region26: #{generator_32_forward.7} parent=23 // pred_check_branch
          %130 = sbr.rel (%p128) target = $region28
        $region27: #{generator_32_forward.7} parent=23 // pred_region
          %s131 = smul.u32 48, %s9
          %p132 = scmp.lt.s32.totalorder %s131, 95
          %s133 = scalar_select %p132, %s131, 95
          %s134 = smul.addr %s133, 4
          %s135 = scalar_lea.vmem %s1, %s134
          %s136 = smul.u32 48, %s9
        $region28: #{generator_32_forward.7} parent=23 // pred_fallthru
          _
      $region24: #{generator_32_forward.7} parent=5 // pred_fallthru
        _
      %p137 = scmp.le.s32.totalorder 1, %s9
      %p138 = scmp.lt.s32.totalorder %s9, 3
      %p139 = pnand %p137, %p138
      %p140 = pneg %p139
      // Predicated region
      $region29: #{generator_32_forward.7} parent=5 // pred_check
        _
      $region30: #{generator_32_forward.7} parent=5 // pred_check_branch
        %142 = sbr.rel (%p139) target = $region32
      $region31: #{generator_32_forward.7} parent=5 // pred_region
        %s143 = ssub.s32 %s9, 1
        %p144 = pneg %p30
        %p145 = pneg %p27
        %s146 = smul.u32 48, %s14
        %p147 = scmp.lt.s32.totalorder %s146, 95
        %s148 = scalar_select %p147, %s146, 95
        %s149 = smul.addr %s148, 4
        %s150 = scalar_lea.vmem %s1, %s149
        %p151 = pneg %p56
        %p152 = pneg %p53
        %p153 = pneg %p77
        %p154 = pneg %p74
        %p155 = pneg %p103
        %p156 = pneg %p100
        %s157 = sand.u32 %s90, 1
        %s158 = sand.u32 %s90, 1
        %s159 = smul.addr %s158, 48
        %s160 = scalar_lea.vmem [#allocation2], %s159
        %s161 = smul.u32 48, %s14
        %p162 = scmp.lt.s32.totalorder %s161, 95
        %s163 = scalar_select %p162, %s161, 95
        %s164 = smul.addr %s163, 4
        %s165 = scalar_lea.vmem %s1, %s164
        %s166 = smul.u32 48, %s14
        %s167 = smul.u32 3, %s14
        %v168 = vld [vmem:[%s0] sm:$0xf]
        %v169 = vld [vmem:[%s0 + $0x4] sm:$0xf]
        %v170 = vld [vmem:[%s165] sm:$0xf]
        %v171 = vld [vmem:[%s165 + $0x4] sm:$0xf]
        %v172 = vld [vmem:[%s165 + $0x8] sm:$0xf]
        %v173 = vld [vmem:[%s165 + $0xc] sm:$0xf]
        %v174 = vld [vmem:[%s165 + $0x10] sm:$0xf]
        %v175 = vld [vmem:[%s165 + $0x14] sm:$0xf]
        %v176 = vld [vmem:[%s165 + $0x18] sm:$0xf]
        %v177 = vld [vmem:[%s165 + $0x1c] sm:$0xf]
        %v178 = vld [vmem:[%s165 + $0x20] sm:$0xf]
        %v179 = vld [vmem:[%s165 + $0x24] sm:$0xf]
        %v180 = vld [vmem:[%s165 + $0x28] sm:$0xf]
        %v181 = vld [vmem:[%s165 + $0x2c] sm:$0xf]
        %v182 = vld [vmem:[%s165 + $0x30] sm:$0xf]
        %v183 = vld [vmem:[%s165 + $0x34] sm:$0xf]
        %v184 = vld [vmem:[%s165 + $0x38] sm:$0xf]
        %v185 = vld [vmem:[%s165 + $0x3c] sm:$0xf]
        %v186 = vld [vmem:[%s165 + $0x40] sm:$0xf]
        %v187 = vld [vmem:[%s165 + $0x44] sm:$0xf]
        %v188 = vld [vmem:[%s165 + $0x48] sm:$0xf]
        %v189 = vld [vmem:[%s165 + $0x4c] sm:$0xf]
        %v190 = vld [vmem:[%s165 + $0x50] sm:$0xf]
        %v191 = vld [vmem:[%s165 + $0x54] sm:$0xf]
        %v192 = vld [vmem:[%s165 + $0x58] sm:$0xf]
        %v193 = vld [vmem:[%s165 + $0x5c] sm:$0xf]
        %v194 = vld [vmem:[%s165 + $0x60] sm:$0xf]
        %v195 = vld [vmem:[%s165 + $0x64] sm:$0xf]
        %v196 = vld [vmem:[%s165 + $0x68] sm:$0xf]
        %v197 = vld [vmem:[%s165 + $0x6c] sm:$0xf]
        %v198 = vld [vmem:[%s165 + $0x70] sm:$0xf]
        %v199 = vld [vmem:[%s165 + $0x74] sm:$0xf]
        %v200 = vld [vmem:[%s165 + $0x78] sm:$0xf]
        %v201 = vld [vmem:[%s165 + $0x7c] sm:$0xf]
        %v202 = vld [vmem:[%s165 + $0x80] sm:$0xf]
        %v203 = vld [vmem:[%s165 + $0x84] sm:$0xf]
        %v204 = vld [vmem:[%s165 + $0x88] sm:$0xf]
        %v205 = vld [vmem:[%s165 + $0x8c] sm:$0xf]
        %v206 = vld [vmem:[%s165 + $0x90] sm:$0xf]
        %v207 = vld [vmem:[%s165 + $0x94] sm:$0xf]
        %v208 = vld [vmem:[%s165 + $0x98] sm:$0xf]
        %v209 = vld [vmem:[%s165 + $0x9c] sm:$0xf]
        %v210 = vld [vmem:[%s165 + $0xa0] sm:$0xf]
        %v211 = vld [vmem:[%s165 + $0xa4] sm:$0xf]
        %v212 = vld [vmem:[%s165 + $0xa8] sm:$0xf]
        %v213 = vld [vmem:[%s165 + $0xac] sm:$0xf]
        %v214 = vld [vmem:[%s165 + $0xb0] sm:$0xf]
        %v215 = vld [vmem:[%s165 + $0xb4] sm:$0xf]
        %v216 = vld [vmem:[%s165 + $0xb8] sm:$0xf]
        %v217 = vld [vmem:[%s165 + $0xbc] sm:$0xf]
        %v218 = vld [vmem:[%s2] sm:$0xff]
        %v219 = vld [vmem:[%s2 + $0x8] sm:$0xff]
        %221 = vset.pattern.permute.xlu0 0
        %222 = vperm.xlu0 %221, %v218
        %v223 = vpop.permute.xlu0 %222
        %226 = vset.pattern.permute.xlu0 0
        %227 = vperm.xlu0 %226, %v219
        %v228 = vpop.permute.xlu0 %227
        %v232 = vunpack.c.l.b16 %v168
        %v233 = vunpack.c.l.b16 %v169
        %v234 = vpack.c.b16 %v233, %v232
        %v284 = vunpack.c.l.b16 %v170
        %v285 = vunpack.c.l.b16 %v171
        %v286 = vunpack.c.l.b16 %v172
        %v287 = vunpack.c.l.b16 %v173
        %v288 = vunpack.c.l.b16 %v174
        %v289 = vunpack.c.l.b16 %v175
        %v290 = vunpack.c.l.b16 %v176
        %v291 = vunpack.c.l.b16 %v177
        %v292 = vunpack.c.l.b16 %v178
        %v293 = vunpack.c.l.b16 %v179
        %v294 = vunpack.c.l.b16 %v180
        %v295 = vunpack.c.l.b16 %v181
        %v296 = vunpack.c.l.b16 %v182
        %v297 = vunpack.c.l.b16 %v183
        %v298 = vunpack.c.l.b16 %v184
        %v299 = vunpack.c.l.b16 %v185
        %v300 = vunpack.c.l.b16 %v186
        %v301 = vunpack.c.l.b16 %v187
        %v302 = vunpack.c.l.b16 %v188
        %v303 = vunpack.c.l.b16 %v189
        %v304 = vunpack.c.l.b16 %v190
        %v305 = vunpack.c.l.b16 %v191
        %v306 = vunpack.c.l.b16 %v192
        %v307 = vunpack.c.l.b16 %v193
        %v308 = vunpack.c.l.b16 %v194
        %v309 = vunpack.c.l.b16 %v195
        %v310 = vunpack.c.l.b16 %v196
        %v311 = vunpack.c.l.b16 %v197
        %v312 = vunpack.c.l.b16 %v198
        %v313 = vunpack.c.l.b16 %v199
        %v314 = vunpack.c.l.b16 %v200
        %v315 = vunpack.c.l.b16 %v201
        %v316 = vunpack.c.l.b16 %v202
        %v317 = vunpack.c.l.b16 %v203
        %v318 = vunpack.c.l.b16 %v204
        %v319 = vunpack.c.l.b16 %v205
        %v320 = vunpack.c.l.b16 %v206
        %v321 = vunpack.c.l.b16 %v207
        %v322 = vunpack.c.l.b16 %v208
        %v323 = vunpack.c.l.b16 %v209
        %v324 = vunpack.c.l.b16 %v210
        %v325 = vunpack.c.l.b16 %v211
        %v326 = vunpack.c.l.b16 %v212
        %v327 = vunpack.c.l.b16 %v213
        %v328 = vunpack.c.l.b16 %v214
        %v329 = vunpack.c.l.b16 %v215
        %v330 = vunpack.c.l.b16 %v216
        %v331 = vunpack.c.l.b16 %v217
        %v332 = vpack.c.b16 %v285, %v284
        %v333 = vpack.c.b16 %v287, %v286
        %v334 = vpack.c.b16 %v289, %v288
        %v335 = vpack.c.b16 %v291, %v290
        %v336 = vpack.c.b16 %v293, %v292
        %v337 = vpack.c.b16 %v295, %v294
        %v338 = vpack.c.b16 %v297, %v296
        %v339 = vpack.c.b16 %v299, %v298
        %v340 = vpack.c.b16 %v301, %v300
        %v341 = vpack.c.b16 %v303, %v302
        %v342 = vpack.c.b16 %v305, %v304
        %v343 = vpack.c.b16 %v307, %v306
        %v344 = vpack.c.b16 %v309, %v308
        %v345 = vpack.c.b16 %v311, %v310
        %v346 = vpack.c.b16 %v313, %v312
        %v347 = vpack.c.b16 %v315, %v314
        %v348 = vpack.c.b16 %v317, %v316
        %v349 = vpack.c.b16 %v319, %v318
        %v350 = vpack.c.b16 %v321, %v320
        %v351 = vpack.c.b16 %v323, %v322
        %v352 = vpack.c.b16 %v325, %v324
        %v353 = vpack.c.b16 %v327, %v326
        %v354 = vpack.c.b16 %v329, %v328
        %v355 = vpack.c.b16 %v331, %v330
        %380 = vmatpush.bf16.xpose.msra.mxu0 %v339
        %381 = vmatpush.bf16.xpose.msra.mxu0 %v338
        %382 = vmatpush.bf16.xpose.msra.mxu0 %v337
        %383 = vmatpush.bf16.xpose.msra.mxu0 %v336
        %384 = vmatpush.bf16.xpose.msra.mxu0 %v335
        %385 = vmatpush.bf16.xpose.msra.mxu0 %v334
        %386 = vmatpush.bf16.xpose.msra.mxu0 %v333
        %387 = vmatpush.bf16.xpose.msra.mxu0 %v332
        %388 = vmatmul.bf16.gmra.mxu0 %v234
        %v389 = vpop.f32.mrf.mxu0
        %v390 = vadd.f32 %v223, %v389
        %v391 = vpop.f32.mrf.mxu0
        %v392 = vadd.f32 %v228, %v391
        %393 = vdwg.mxu0
        %394 = vmatpush.bf16.xpose.msra.mxu0 %v347
        %395 = vmatpush.bf16.xpose.msra.mxu0 %v346
        %396 = vmatpush.bf16.xpose.msra.mxu0 %v345
        %397 = vmatpush.bf16.xpose.msra.mxu0 %v344
        %398 = vmatpush.bf16.xpose.msra.mxu0 %v343
        %399 = vmatpush.bf16.xpose.msra.mxu0 %v342
        %400 = vmatpush.bf16.xpose.msra.mxu0 %v341
        %401 = vmatpush.bf16.xpose.msra.mxu0 %v340
        %402 = vmatmul.bf16.gmra.mxu0 %v234
        %v403 = vpop.f32.mrf.mxu0
        %v404 = vadd.f32 %v223, %v403
        %v405 = vpop.f32.mrf.mxu0
        %v406 = vadd.f32 %v228, %v405
        %407 = vdwg.mxu0
        %408 = vmatpush.bf16.xpose.msra.mxu0 %v355
        %409 = vmatpush.bf16.xpose.msra.mxu0 %v354
        %410 = vmatpush.bf16.xpose.msra.mxu0 %v353
        %411 = vmatpush.bf16.xpose.msra.mxu0 %v352
        %412 = vmatpush.bf16.xpose.msra.mxu0 %v351
        %413 = vmatpush.bf16.xpose.msra.mxu0 %v350
        %414 = vmatpush.bf16.xpose.msra.mxu0 %v349
        %415 = vmatpush.bf16.xpose.msra.mxu0 %v348
        %416 = vmatmul.bf16.gmra.mxu0 %v234
        %v417 = vpop.f32.mrf.mxu0
        %v418 = vadd.f32 %v223, %v417
        %v419 = vpop.f32.mrf.mxu0
        %v420 = vadd.f32 %v228, %v419
        %421 = vdwg.mxu0
        %v422 = vtanh.pop %v390
        %v423 = vtanh.pop %v404
        %v424 = vtanh.pop %v418
        %v425 = vtanh.pop %v392
        %v426 = vtanh.pop %v406
        %v427 = vtanh.pop %v420
        %428 = vst [vmem:[%s160] sm:$0xff] %v422
        %429 = vst [vmem:[%s160 + $0x8] sm:$0xff] %v423
        %430 = vst [vmem:[%s160 + $0x10] sm:$0xff] %v424
        %431 = vst [vmem:[%s160 + $0x18] sm:$0xff] %v425
        %432 = vst [vmem:[%s160 + $0x20] sm:$0xff] %v426
        %433 = vst [vmem:[%s160 + $0x28] sm:$0xff] %v427
        %s434 = sand.u32 %s90, 1
        %s435 = sand.u32 %s90, 1
        %s436 = smul.addr %s435, 48
        %s437 = scalar_lea.vmem [#allocation2], %s436
        // Predicated region
        $region33: #{generator_32_forward.7} parent=31 // pred_check
          %p438 = pneg %p100
        $region34: #{generator_32_forward.7} parent=31 // pred_check_branch
          %440 = sbr.rel (%p438) target = $region36
        $region35: #{generator_32_forward.7} parent=31 // pred_region
          %s441 = smul.u32 3, %s14
          %s442 = smul.addr %s441, 8
          %s443 = scalar_lea.vmem %s3, %s442
          // Predicated region
          $region37: #{generator_32_forward.7} parent=35 // pred_check
            _
          $region38: #{generator_32_forward.7} parent=35 // pred_check_branch
            %445 = sbr.rel (0) target = $region40
          $region39: #{generator_32_forward.7} parent=35 // pred_region
            // Predicated region
            $region41: #{generator_32_forward.7} parent=39 // pred_check
              _
            $region42: #{generator_32_forward.7} parent=39 // pred_check_branch
              %447 = sbr.rel (0) target = $region44
            $region43: #{generator_32_forward.7} parent=39 // pred_region
              loop: start=0, step=1, limit=1
              $region45: #{generator_32_forward.7} parent=43 // loop_pre_header
                _
              $region46: #{generator_32_forward.7} parent=43 // loop_header
                %s449 = sphi 0, %s453
                %p450 = scmp.ge.s32.totalorder %s449, 1
                %s454 = sphi %s437, %s437
                %s455 = sphi %s443, %s443
              $region47: #{generator_32_forward.7} parent=43 // loop_header_branch
                %452 = sbr.rel (%p450) target = $region51
              $region48: #{generator_32_forward.7} parent=43 // loop_body
                %v456 = vld [vmem:[%s454] sm:$0xff]
                %457 = vst [vmem:[%s455] sm:$0xff] %v456
                %v458 = vld [vmem:[%s454 + $0x8] sm:$0xff]
                %459 = vst [vmem:[%s455 + $0x8] sm:$0xff] %v458
                %v460 = vld [vmem:[%s454 + $0x10] sm:$0xff]
                %461 = vst [vmem:[%s455 + $0x10] sm:$0xff] %v460
                %v462 = vld [vmem:[%s454 + $0x18] sm:$0xff]
                %463 = vst [vmem:[%s455 + $0x30] sm:$0xff] %v462
                %v464 = vld [vmem:[%s454 + $0x20] sm:$0xff]
                %465 = vst [vmem:[%s455 + $0x38] sm:$0xff] %v464
                %v466 = vld [vmem:[%s454 + $0x28] sm:$0xff]
                %467 = vst [vmem:[%s455 + $0x40] sm:$0xff] %v466
              $region49: #{generator_32_forward.7} parent=43 // loop_footer
                %s453 = sadd.s32 1, %s449
              $region50: #{generator_32_forward.7} parent=43 // loop_footer_branch
                %448 = sbr.rel target = $region46
              $region51: #{generator_32_forward.7} parent=43 // loop_exit
                _
            $region44: #{generator_32_forward.7} parent=39 // pred_fallthru
              _
            // Predicated region
            $region52: #{generator_32_forward.7} parent=39 // pred_check
              _
            $region53: #{generator_32_forward.7} parent=39 // pred_check_branch
              %469 = sbr.rel target = $region55
            $region54: #{generator_32_forward.7} parent=39 // pred_region
              _
            $region55: #{generator_32_forward.7} parent=39 // pred_fallthru
              _
          $region40: #{generator_32_forward.7} parent=35 // pred_fallthru
            _
          %470 = vnop
        $region36: #{generator_32_forward.7} parent=31 // pred_fallthru
          _
      $region32: #{generator_32_forward.7} parent=5 // pred_fallthru
        _
      %p471 = scmp.le.s32.totalorder 2, %s9
      // Predicated region
      $region56: #{generator_32_forward.7} parent=5 // pred_check
        %p472 = pneg %p471
      $region57: #{generator_32_forward.7} parent=5 // pred_check_branch
        %474 = sbr.rel (%p472) target = $region59
      $region58: #{generator_32_forward.7} parent=5 // pred_region
        %s475 = ssub.s32 %s9, 2
        // Predicated region
        $region60: #{generator_32_forward.7} parent=58 // pred_check
          %p476 = pneg %p106
        $region61: #{generator_32_forward.7} parent=58 // pred_check_branch
          %478 = sbr.rel (%p476) target = $region63
        $region62: #{generator_32_forward.7} parent=58 // pred_region
          %s479 = sand.u32 %s91, 1
          %s480 = sand.u32 %s91, 1
          %s481 = smul.addr %s480, 48
          %s482 = scalar_lea.vmem [#allocation2], %s481
        $region63: #{generator_32_forward.7} parent=58 // pred_fallthru
          _
      $region59: #{generator_32_forward.7} parent=5 // pred_fallthru
        _
    $region6: #{generator_32_forward.7} parent=1 // loop_footer
      %s13 = sadd.s32 1, %s9
    $region7: #{generator_32_forward.7} parent=1 // loop_footer_branch
      %8 = sbr.rel target = $region3
    $region8: #{generator_32_forward.7} parent=1 // loop_exit
      _

</llo_original>
